<compile_context>
chip_gen: v6e
topology: v6e:2x2x1
jax: 0.10.0
libtpu: 0.0.40
codegen_flags: <defaults>
</compile_context>

<pallas_src>
import jax
import jax.numpy as jnp
from jax import lax
from jax.experimental import pallas as pl
from jax.experimental.pallas import tpu as pltpu


# ----------------------------- fused kernel --------------------------------

def _make_fused_kernel(nlayers, S, B, H):
    fourH = 4 * H

    def kernel(tok_ref, emb_ref, h0_ref, c0_ref, *rest):
        # rest = [w_ih_0, w_hh_0, b_0, ..., w_ih_{L-1}, w_hh_{L-1}, b_{L-1},
        #         w_dec, b_dec, out_ref, hT_ref, cT_ref]
        nw = 3 * nlayers
        wrefs = rest[:nw]
        wdec_ref = rest[nw]
        bdec_ref = rest[nw + 1]
        out_ref, hT_ref, cT_ref = rest[nw + 2], rest[nw + 3], rest[nw + 4]

        # ---- embedding gather, exact, fully in-VMEM ------------------------
        # emb_ref is (ntoken, 1, D); dynamic index on the untiled leading axis.
        rows = [emb_ref[tok_ref[i]] for i in range(S * B)]       # each (1, D)
        x = jnp.concatenate(rows, axis=0)                        # (S*B, D)
        # self.drop(emb): identity in eval mode.

        # Lane mask selecting the "g" (tanh) quarter of the fused 4H gates —
        # hoisted once; lets us use 2 full-width EUP ops + one select.
        lane = lax.broadcasted_iota(jnp.int32, (B, fourH), 1)
        g_mask = (lane >= 2 * H) & (lane < 3 * H)

        flat = None
        for l in range(nlayers):
            wih = wrefs[3 * l][...]                              # (Din, 4H)
            whh = wrefs[3 * l + 1][...]                          # (H, 4H)
            b = wrefs[3 * l + 2][...]                            # (1, 4H)

            # Hoisted input projection + bias for ALL timesteps (one matmul).
            gates_x = jnp.dot(x, wih,
                              preferred_element_type=jnp.float32) + b  # (S*B,4H)

            h = h0_ref[l]                                        # (B, H)
            c = c0_ref[l]                                        # (B, H)
            hs = []
            for t in range(S):          # S is static -> fully unrolled
                gates = gates_x[t * B:(t + 1) * B, :] + jnp.dot(
                    h, whh, preferred_element_type=jnp.float32)  # (B, 4H)
                act = jnp.where(g_mask, jnp.tanh(gates), jax.nn.sigmoid(gates))
                i_g = act[:, 0 * H:1 * H]
                f_g = act[:, 1 * H:2 * H]
                g_g = act[:, 2 * H:3 * H]
                o_g = act[:, 3 * H:4 * H]
                c = f_g * c + i_g * g_g
                h = o_g * jnp.tanh(c)
                hs.append(h)

            hT_ref[l] = h
            cT_ref[l] = c

            if l + 1 < nlayers:
                # (S*B, H): time-major stack, feeds next layer's hoisted proj.
                x = jnp.concatenate(hs, axis=0)
            else:
                # (B, S*H): lane-dense decoder input, equals
                # output.transpose(0,1).contiguous().view(B, -1)
                flat = jnp.concatenate(hs, axis=-1)

        # self.drop(output): identity in eval mode.
        out_ref[...] = (jnp.dot(flat, wdec_ref[...],
                                preferred_element_type=jnp.float32)
                        + bdec_ref[...])

    return kernel


# ------------------------------ wrapper -------------------------------------

def rnn_model_forward(params, tokens, hidden):
    """Mirrors RNNModel.forward (rnn_type='LSTM', eval-mode dropout)."""
    S, B = tokens.shape
    h0, c0 = hidden                                   # (L, B, H) each
    L, _, H = h0.shape
    ntoken, D = params["emb"].shape
    V = params["w_dec_t"].shape[1]

    emb3 = params["emb"].reshape(ntoken, 1, D)        # leading-axis gather layout
    tok_flat = tokens.reshape(S * B).astype(jnp.int32)

    weight_args = []
    for l in range(L):
        weight_args += [params["w_ih_t"][l], params["w_hh_t"][l], params["b"][l]]

    smem = pl.BlockSpec(memory_space=pltpu.MemorySpace.SMEM)
    vmem = pl.BlockSpec(memory_space=pltpu.MemorySpace.VMEM)
    n_in = 4 + 3 * L + 2

    decoded, hT, cT = pl.pallas_call(
        _make_fused_kernel(L, S, B, H),
        out_shape=(jax.ShapeDtypeStruct((B, V), jnp.float32),
                   jax.ShapeDtypeStruct((L, B, H), jnp.float32),
                   jax.ShapeDtypeStruct((L, B, H), jnp.float32)),
        in_specs=[smem] + [vmem] * (n_in - 1),
        out_specs=(vmem, vmem, vmem),
    )(tok_flat, emb3, h0, c0, *weight_args,
      params["w_dec_t"], params["b_dec"])

    return decoded, (hT, cT)


# --------------------------- pure-JAX reference ------------------------------

def _lstm_layer_ref(x, h0, c0, w_ih_t, w_hh_t, b):
    H = h0.shape[1]

    def step(carry, x_t):
        h, c = carry
        gates = x_t @ w_ih_t + h @ w_hh_t + b
        i = jax.nn.sigmoid(gates[:, :H])
        f = jax.nn.sigmoid(gates[:, H:2 * H])
        g = jnp.tanh(gates[:, 2 * H:3 * H])
        o = jax.nn.sigmoid(gates[:, 3 * H:])
        c = f * c + i * g
        h = o * jnp.tanh(c)
        return (h, c), h

    (hT, cT), ys = lax.scan(step, (h0, c0), x)
    return ys, hT, cT


def _forward_ref(params, tokens, hidden):
    emb = jnp.take(params["emb"], tokens, axis=0)
    h0, c0 = hidden
    x = emb
    hs, cs = [], []
    for l in range(len(params["w_ih_t"])):
        x, hT, cT = _lstm_layer_ref(x, h0[l], c0[l],
                                    params["w_ih_t"][l],
                                    params["w_hh_t"][l],
                                    params["b"][l])
        hs.append(hT)
        cs.append(cT)
    S, B, H = x.shape
    flat = jnp.transpose(x, (1, 0, 2)).reshape(B, S * H)
    decoded = flat @ params["w_dec_t"] + params["b_dec"]
    return decoded, (jnp.stack(hs), jnp.stack(cs))


# --------------------------------- main --------------------------------------

if __name__ == "__main__":
    # model config (ngrams == seq_len so decoder in-dim = nhid * ngrams)
    ntoken, ninp, nhid, nlayers = 64, 32, 32, 2
    ngrams = 4                       # args.ngrams
    seq_len, batch = ngrams, 8       # batch=8 fills one sublane group

    key = jax.random.PRNGKey(0)
    keys = jax.random.split(key, 16)
    initrange = 0.1
    k_rnn = 1.0 / jnp.sqrt(nhid)

    params = {
        "emb": jax.random.uniform(keys[0], (ntoken, ninp), jnp.float32,
                                  -initrange, initrange),
        "w_ih_t": [], "w_hh_t": [], "b": [],
        # decoder.weight (ntoken, nhid*ngrams) stored transposed
        "w_dec_t": jax.random.uniform(keys[1], (ntoken, nhid * ngrams),
                                      jnp.float32, -initrange, initrange).T,
        "b_dec": jnp.zeros((1, ntoken), jnp.float32),
    }
    for l in range(nlayers):
        din = ninp if l == 0 else nhid
        kw = jax.random.split(keys[2 + l], 4)
        w_ih = jax.random.uniform(kw[0], (4 * nhid, din), jnp.float32, -k_rnn, k_rnn)
        w_hh = jax.random.uniform(kw[1], (4 * nhid, nhid), jnp.float32, -k_rnn, k_rnn)
        b_ih = jax.random.uniform(kw[2], (4 * nhid,), jnp.float32, -k_rnn, k_rnn)
        b_hh = jax.random.uniform(kw[3], (4 * nhid,), jnp.float32, -k_rnn, k_rnn)
        params["w_ih_t"].append(w_ih.T)
        params["w_hh_t"].append(w_hh.T)
        params["b"].append((b_ih + b_hh).reshape(1, 4 * nhid))

    tokens = jax.random.randint(keys[10], (seq_len, batch), 0, ntoken, jnp.int32)
    hidden = (jnp.zeros((nlayers, batch, nhid), jnp.float32),
              jnp.zeros((nlayers, batch, nhid), jnp.float32))

    decoded, new_hidden = rnn_model_forward(params, tokens, hidden)
    decoded = jax.block_until_ready(decoded)
    jax.block_until_ready(new_hidden)

    ref_dec, (ref_h, ref_c) = _forward_ref(params, tokens, hidden)
    assert decoded.shape == (batch, ntoken)
    assert jnp.allclose(decoded, ref_dec, atol=1e-5, rtol=1e-5), "decoded mismatch"
    assert jnp.allclose(new_hidden[0], ref_h, atol=1e-5, rtol=1e-5), "h mismatch"
    assert jnp.allclose(new_hidden[1], ref_c, atol=1e-5, rtol=1e-5), "c mismatch"

    print("KERNEL_OK")
</pallas_src>

<mosaic_0001>
module attributes {stable_mosaic.version = 11 : i64} {
  func.func @kernel(%arg0: memref<32xi32, #tpu.memory_space<smem>>, %arg1: memref<64x1x32xf32, #tpu.memory_space<vmem>>, %arg2: memref<2x8x32xf32, #tpu.memory_space<vmem>>, %arg3: memref<2x8x32xf32, #tpu.memory_space<vmem>>, %arg4: memref<32x128xf32, #tpu.memory_space<vmem>>, %arg5: memref<32x128xf32, #tpu.memory_space<vmem>>, %arg6: memref<1x128xf32, #tpu.memory_space<vmem>>, %arg7: memref<32x128xf32, #tpu.memory_space<vmem>>, %arg8: memref<32x128xf32, #tpu.memory_space<vmem>>, %arg9: memref<1x128xf32, #tpu.memory_space<vmem>>, %arg10: memref<128x64xf32, #tpu.memory_space<vmem>>, %arg11: memref<1x64xf32, #tpu.memory_space<vmem>>, %arg12: memref<8x64xf32, #tpu.memory_space<vmem>>, %arg13: memref<2x8x32xf32, #tpu.memory_space<vmem>>, %arg14: memref<2x8x32xf32, #tpu.memory_space<vmem>>) attributes {dimension_semantics = [], scalar_prefetch = 0 : i64, scratch_operands = 0 : i64, tpu.core_type = #tpu.core_type<tc>} {
    %c0 = arith.constant 0 : index
    %0 = memref.load %arg0[%c0] : memref<32xi32, #tpu.memory_space<smem>>
    %1 = arith.index_cast %0 : i32 to index
    %c0_0 = arith.constant 0 : index
    %c0_1 = arith.constant 0 : index
    %2 = vector.load %arg1[%1, %c0_0, %c0_1] : memref<64x1x32xf32, #tpu.memory_space<vmem>>, vector<1x1x32xf32>
    %3 = vector.shape_cast %2 : vector<1x1x32xf32> to vector<1x32xf32>
    %c1 = arith.constant 1 : index
    %4 = memref.load %arg0[%c1] : memref<32xi32, #tpu.memory_space<smem>>
    %5 = arith.index_cast %4 : i32 to index
    %c0_2 = arith.constant 0 : index
    %c0_3 = arith.constant 0 : index
    %6 = vector.load %arg1[%5, %c0_2, %c0_3] : memref<64x1x32xf32, #tpu.memory_space<vmem>>, vector<1x1x32xf32>
    %7 = vector.shape_cast %6 : vector<1x1x32xf32> to vector<1x32xf32>
    %c2 = arith.constant 2 : index
    %8 = memref.load %arg0[%c2] : memref<32xi32, #tpu.memory_space<smem>>
    %9 = arith.index_cast %8 : i32 to index
    %c0_4 = arith.constant 0 : index
    %c0_5 = arith.constant 0 : index
    %10 = vector.load %arg1[%9, %c0_4, %c0_5] : memref<64x1x32xf32, #tpu.memory_space<vmem>>, vector<1x1x32xf32>
    %11 = vector.shape_cast %10 : vector<1x1x32xf32> to vector<1x32xf32>
    %c3 = arith.constant 3 : index
    %12 = memref.load %arg0[%c3] : memref<32xi32, #tpu.memory_space<smem>>
    %13 = arith.index_cast %12 : i32 to index
    %c0_6 = arith.constant 0 : index
    %c0_7 = arith.constant 0 : index
    %14 = vector.load %arg1[%13, %c0_6, %c0_7] : memref<64x1x32xf32, #tpu.memory_space<vmem>>, vector<1x1x32xf32>
    %15 = vector.shape_cast %14 : vector<1x1x32xf32> to vector<1x32xf32>
    %c4 = arith.constant 4 : index
    %16 = memref.load %arg0[%c4] : memref<32xi32, #tpu.memory_space<smem>>
    %17 = arith.index_cast %16 : i32 to index
    %c0_8 = arith.constant 0 : index
    %c0_9 = arith.constant 0 : index
    %18 = vector.load %arg1[%17, %c0_8, %c0_9] : memref<64x1x32xf32, #tpu.memory_space<vmem>>, vector<1x1x32xf32>
    %19 = vector.shape_cast %18 : vector<1x1x32xf32> to vector<1x32xf32>
    %c5 = arith.constant 5 : index
    %20 = memref.load %arg0[%c5] : memref<32xi32, #tpu.memory_space<smem>>
    %21 = arith.index_cast %20 : i32 to index
    %c0_10 = arith.constant 0 : index
    %c0_11 = arith.constant 0 : index
    %22 = vector.load %arg1[%21, %c0_10, %c0_11] : memref<64x1x32xf32, #tpu.memory_space<vmem>>, vector<1x1x32xf32>
    %23 = vector.shape_cast %22 : vector<1x1x32xf32> to vector<1x32xf32>
    %c6 = arith.constant 6 : index
    %24 = memref.load %arg0[%c6] : memref<32xi32, #tpu.memory_space<smem>>
    %25 = arith.index_cast %24 : i32 to index
    %c0_12 = arith.constant 0 : index
    %c0_13 = arith.constant 0 : index
    %26 = vector.load %arg1[%25, %c0_12, %c0_13] : memref<64x1x32xf32, #tpu.memory_space<vmem>>, vector<1x1x32xf32>
    %27 = vector.shape_cast %26 : vector<1x1x32xf32> to vector<1x32xf32>
    %c7 = arith.constant 7 : index
    %28 = memref.load %arg0[%c7] : memref<32xi32, #tpu.memory_space<smem>>
    %29 = arith.index_cast %28 : i32 to index
    %c0_14 = arith.constant 0 : index
    %c0_15 = arith.constant 0 : index
    %30 = vector.load %arg1[%29, %c0_14, %c0_15] : memref<64x1x32xf32, #tpu.memory_space<vmem>>, vector<1x1x32xf32>
    %31 = vector.shape_cast %30 : vector<1x1x32xf32> to vector<1x32xf32>
    %c8 = arith.constant 8 : index
    %32 = memref.load %arg0[%c8] : memref<32xi32, #tpu.memory_space<smem>>
    %33 = arith.index_cast %32 : i32 to index
    %c0_16 = arith.constant 0 : index
    %c0_17 = arith.constant 0 : index
    %34 = vector.load %arg1[%33, %c0_16, %c0_17] : memref<64x1x32xf32, #tpu.memory_space<vmem>>, vector<1x1x32xf32>
    %35 = vector.shape_cast %34 : vector<1x1x32xf32> to vector<1x32xf32>
    %c9 = arith.constant 9 : index
    %36 = memref.load %arg0[%c9] : memref<32xi32, #tpu.memory_space<smem>>
    %37 = arith.index_cast %36 : i32 to index
    %c0_18 = arith.constant 0 : index
    %c0_19 = arith.constant 0 : index
    %38 = vector.load %arg1[%37, %c0_18, %c0_19] : memref<64x1x32xf32, #tpu.memory_space<vmem>>, vector<1x1x32xf32>
    %39 = vector.shape_cast %38 : vector<1x1x32xf32> to vector<1x32xf32>
    %c10 = arith.constant 10 : index
    %40 = memref.load %arg0[%c10] : memref<32xi32, #tpu.memory_space<smem>>
    %41 = arith.index_cast %40 : i32 to index
    %c0_20 = arith.constant 0 : index
    %c0_21 = arith.constant 0 : index
    %42 = vector.load %arg1[%41, %c0_20, %c0_21] : memref<64x1x32xf32, #tpu.memory_space<vmem>>, vector<1x1x32xf32>
    %43 = vector.shape_cast %42 : vector<1x1x32xf32> to vector<1x32xf32>
    %c11 = arith.constant 11 : index
    %44 = memref.load %arg0[%c11] : memref<32xi32, #tpu.memory_space<smem>>
    %45 = arith.index_cast %44 : i32 to index
    %c0_22 = arith.constant 0 : index
    %c0_23 = arith.constant 0 : index
    %46 = vector.load %arg1[%45, %c0_22, %c0_23] : memref<64x1x32xf32, #tpu.memory_space<vmem>>, vector<1x1x32xf32>
    %47 = vector.shape_cast %46 : vector<1x1x32xf32> to vector<1x32xf32>
    %c12 = arith.constant 12 : index
    %48 = memref.load %arg0[%c12] : memref<32xi32, #tpu.memory_space<smem>>
    %49 = arith.index_cast %48 : i32 to index
    %c0_24 = arith.constant 0 : index
    %c0_25 = arith.constant 0 : index
    %50 = vector.load %arg1[%49, %c0_24, %c0_25] : memref<64x1x32xf32, #tpu.memory_space<vmem>>, vector<1x1x32xf32>
    %51 = vector.shape_cast %50 : vector<1x1x32xf32> to vector<1x32xf32>
    %c13 = arith.constant 13 : index
    %52 = memref.load %arg0[%c13] : memref<32xi32, #tpu.memory_space<smem>>
    %53 = arith.index_cast %52 : i32 to index
    %c0_26 = arith.constant 0 : index
    %c0_27 = arith.constant 0 : index
    %54 = vector.load %arg1[%53, %c0_26, %c0_27] : memref<64x1x32xf32, #tpu.memory_space<vmem>>, vector<1x1x32xf32>
    %55 = vector.shape_cast %54 : vector<1x1x32xf32> to vector<1x32xf32>
    %c14 = arith.constant 14 : index
    %56 = memref.load %arg0[%c14] : memref<32xi32, #tpu.memory_space<smem>>
    %57 = arith.index_cast %56 : i32 to index
    %c0_28 = arith.constant 0 : index
    %c0_29 = arith.constant 0 : index
    %58 = vector.load %arg1[%57, %c0_28, %c0_29] : memref<64x1x32xf32, #tpu.memory_space<vmem>>, vector<1x1x32xf32>
    %59 = vector.shape_cast %58 : vector<1x1x32xf32> to vector<1x32xf32>
    %c15 = arith.constant 15 : index
    %60 = memref.load %arg0[%c15] : memref<32xi32, #tpu.memory_space<smem>>
    %61 = arith.index_cast %60 : i32 to index
    %c0_30 = arith.constant 0 : index
    %c0_31 = arith.constant 0 : index
    %62 = vector.load %arg1[%61, %c0_30, %c0_31] : memref<64x1x32xf32, #tpu.memory_space<vmem>>, vector<1x1x32xf32>
    %63 = vector.shape_cast %62 : vector<1x1x32xf32> to vector<1x32xf32>
    %c16 = arith.constant 16 : index
    %64 = memref.load %arg0[%c16] : memref<32xi32, #tpu.memory_space<smem>>
    %65 = arith.index_cast %64 : i32 to index
    %c0_32 = arith.constant 0 : index
    %c0_33 = arith.constant 0 : index
    %66 = vector.load %arg1[%65, %c0_32, %c0_33] : memref<64x1x32xf32, #tpu.memory_space<vmem>>, vector<1x1x32xf32>
    %67 = vector.shape_cast %66 : vector<1x1x32xf32> to vector<1x32xf32>
    %c17 = arith.constant 17 : index
    %68 = memref.load %arg0[%c17] : memref<32xi32, #tpu.memory_space<smem>>
    %69 = arith.index_cast %68 : i32 to index
    %c0_34 = arith.constant 0 : index
    %c0_35 = arith.constant 0 : index
    %70 = vector.load %arg1[%69, %c0_34, %c0_35] : memref<64x1x32xf32, #tpu.memory_space<vmem>>, vector<1x1x32xf32>
    %71 = vector.shape_cast %70 : vector<1x1x32xf32> to vector<1x32xf32>
    %c18 = arith.constant 18 : index
    %72 = memref.load %arg0[%c18] : memref<32xi32, #tpu.memory_space<smem>>
    %73 = arith.index_cast %72 : i32 to index
    %c0_36 = arith.constant 0 : index
    %c0_37 = arith.constant 0 : index
    %74 = vector.load %arg1[%73, %c0_36, %c0_37] : memref<64x1x32xf32, #tpu.memory_space<vmem>>, vector<1x1x32xf32>
    %75 = vector.shape_cast %74 : vector<1x1x32xf32> to vector<1x32xf32>
    %c19 = arith.constant 19 : index
    %76 = memref.load %arg0[%c19] : memref<32xi32, #tpu.memory_space<smem>>
    %77 = arith.index_cast %76 : i32 to index
    %c0_38 = arith.constant 0 : index
    %c0_39 = arith.constant 0 : index
    %78 = vector.load %arg1[%77, %c0_38, %c0_39] : memref<64x1x32xf32, #tpu.memory_space<vmem>>, vector<1x1x32xf32>
    %79 = vector.shape_cast %78 : vector<1x1x32xf32> to vector<1x32xf32>
    %c20 = arith.constant 20 : index
    %80 = memref.load %arg0[%c20] : memref<32xi32, #tpu.memory_space<smem>>
    %81 = arith.index_cast %80 : i32 to index
    %c0_40 = arith.constant 0 : index
    %c0_41 = arith.constant 0 : index
    %82 = vector.load %arg1[%81, %c0_40, %c0_41] : memref<64x1x32xf32, #tpu.memory_space<vmem>>, vector<1x1x32xf32>
    %83 = vector.shape_cast %82 : vector<1x1x32xf32> to vector<1x32xf32>
    %c21 = arith.constant 21 : index
    %84 = memref.load %arg0[%c21] : memref<32xi32, #tpu.memory_space<smem>>
    %85 = arith.index_cast %84 : i32 to index
    %c0_42 = arith.constant 0 : index
    %c0_43 = arith.constant 0 : index
    %86 = vector.load %arg1[%85, %c0_42, %c0_43] : memref<64x1x32xf32, #tpu.memory_space<vmem>>, vector<1x1x32xf32>
    %87 = vector.shape_cast %86 : vector<1x1x32xf32> to vector<1x32xf32>
    %c22 = arith.constant 22 : index
    %88 = memref.load %arg0[%c22] : memref<32xi32, #tpu.memory_space<smem>>
    %89 = arith.index_cast %88 : i32 to index
    %c0_44 = arith.constant 0 : index
    %c0_45 = arith.constant 0 : index
    %90 = vector.load %arg1[%89, %c0_44, %c0_45] : memref<64x1x32xf32, #tpu.memory_space<vmem>>, vector<1x1x32xf32>
    %91 = vector.shape_cast %90 : vector<1x1x32xf32> to vector<1x32xf32>
    %c23 = arith.constant 23 : index
    %92 = memref.load %arg0[%c23] : memref<32xi32, #tpu.memory_space<smem>>
    %93 = arith.index_cast %92 : i32 to index
    %c0_46 = arith.constant 0 : index
    %c0_47 = arith.constant 0 : index
    %94 = vector.load %arg1[%93, %c0_46, %c0_47] : memref<64x1x32xf32, #tpu.memory_space<vmem>>, vector<1x1x32xf32>
    %95 = vector.shape_cast %94 : vector<1x1x32xf32> to vector<1x32xf32>
    %c24 = arith.constant 24 : index
    %96 = memref.load %arg0[%c24] : memref<32xi32, #tpu.memory_space<smem>>
    %97 = arith.index_cast %96 : i32 to index
    %c0_48 = arith.constant 0 : index
    %c0_49 = arith.constant 0 : index
    %98 = vector.load %arg1[%97, %c0_48, %c0_49] : memref<64x1x32xf32, #tpu.memory_space<vmem>>, vector<1x1x32xf32>
    %99 = vector.shape_cast %98 : vector<1x1x32xf32> to vector<1x32xf32>
    %c25 = arith.constant 25 : index
    %100 = memref.load %arg0[%c25] : memref<32xi32, #tpu.memory_space<smem>>
    %101 = arith.index_cast %100 : i32 to index
    %c0_50 = arith.constant 0 : index
    %c0_51 = arith.constant 0 : index
    %102 = vector.load %arg1[%101, %c0_50, %c0_51] : memref<64x1x32xf32, #tpu.memory_space<vmem>>, vector<1x1x32xf32>
    %103 = vector.shape_cast %102 : vector<1x1x32xf32> to vector<1x32xf32>
    %c26 = arith.constant 26 : index
    %104 = memref.load %arg0[%c26] : memref<32xi32, #tpu.memory_space<smem>>
    %105 = arith.index_cast %104 : i32 to index
    %c0_52 = arith.constant 0 : index
    %c0_53 = arith.constant 0 : index
    %106 = vector.load %arg1[%105, %c0_52, %c0_53] : memref<64x1x32xf32, #tpu.memory_space<vmem>>, vector<1x1x32xf32>
    %107 = vector.shape_cast %106 : vector<1x1x32xf32> to vector<1x32xf32>
    %c27 = arith.constant 27 : index
    %108 = memref.load %arg0[%c27] : memref<32xi32, #tpu.memory_space<smem>>
    %109 = arith.index_cast %108 : i32 to index
    %c0_54 = arith.constant 0 : index
    %c0_55 = arith.constant 0 : index
    %110 = vector.load %arg1[%109, %c0_54, %c0_55] : memref<64x1x32xf32, #tpu.memory_space<vmem>>, vector<1x1x32xf32>
    %111 = vector.shape_cast %110 : vector<1x1x32xf32> to vector<1x32xf32>
    %c28 = arith.constant 28 : index
    %112 = memref.load %arg0[%c28] : memref<32xi32, #tpu.memory_space<smem>>
    %113 = arith.index_cast %112 : i32 to index
    %c0_56 = arith.constant 0 : index
    %c0_57 = arith.constant 0 : index
    %114 = vector.load %arg1[%113, %c0_56, %c0_57] : memref<64x1x32xf32, #tpu.memory_space<vmem>>, vector<1x1x32xf32>
    %115 = vector.shape_cast %114 : vector<1x1x32xf32> to vector<1x32xf32>
    %c29 = arith.constant 29 : index
    %116 = memref.load %arg0[%c29] : memref<32xi32, #tpu.memory_space<smem>>
    %117 = arith.index_cast %116 : i32 to index
    %c0_58 = arith.constant 0 : index
    %c0_59 = arith.constant 0 : index
    %118 = vector.load %arg1[%117, %c0_58, %c0_59] : memref<64x1x32xf32, #tpu.memory_space<vmem>>, vector<1x1x32xf32>
    %119 = vector.shape_cast %118 : vector<1x1x32xf32> to vector<1x32xf32>
    %c30 = arith.constant 30 : index
    %120 = memref.load %arg0[%c30] : memref<32xi32, #tpu.memory_space<smem>>
    %121 = arith.index_cast %120 : i32 to index
    %c0_60 = arith.constant 0 : index
    %c0_61 = arith.constant 0 : index
    %122 = vector.load %arg1[%121, %c0_60, %c0_61] : memref<64x1x32xf32, #tpu.memory_space<vmem>>, vector<1x1x32xf32>
    %123 = vector.shape_cast %122 : vector<1x1x32xf32> to vector<1x32xf32>
    %c31 = arith.constant 31 : index
    %124 = memref.load %arg0[%c31] : memref<32xi32, #tpu.memory_space<smem>>
    %125 = arith.index_cast %124 : i32 to index
    %c0_62 = arith.constant 0 : index
    %c0_63 = arith.constant 0 : index
    %126 = vector.load %arg1[%125, %c0_62, %c0_63] : memref<64x1x32xf32, #tpu.memory_space<vmem>>, vector<1x1x32xf32>
    %127 = vector.shape_cast %126 : vector<1x1x32xf32> to vector<1x32xf32>
    %128 = tpu.concatenate %3, %7, %11, %15, %19, %23, %27, %31, %35, %39, %43, %47, %51, %55, %59, %63 in 0 : vector<1x32xf32>, vector<1x32xf32>, vector<1x32xf32>, vector<1x32xf32>, vector<1x32xf32>, vector<1x32xf32>, vector<1x32xf32>, vector<1x32xf32>, vector<1x32xf32>, vector<1x32xf32>, vector<1x32xf32>, vector<1x32xf32>, vector<1x32xf32>, vector<1x32xf32>, vector<1x32xf32>, vector<1x32xf32> -> vector<16x32xf32>
    %129 = tpu.concatenate %67, %71, %75, %79, %83, %87, %91, %95, %99, %103, %107, %111, %115, %119, %123, %127 in 0 : vector<1x32xf32>, vector<1x32xf32>, vector<1x32xf32>, vector<1x32xf32>, vector<1x32xf32>, vector<1x32xf32>, vector<1x32xf32>, vector<1x32xf32>, vector<1x32xf32>, vector<1x32xf32>, vector<1x32xf32>, vector<1x32xf32>, vector<1x32xf32>, vector<1x32xf32>, vector<1x32xf32>, vector<1x32xf32> -> vector<16x32xf32>
    %130 = tpu.concatenate %128, %129 in 0 : vector<16x32xf32>, vector<16x32xf32> -> vector<32x32xf32>
    %131 = tpu.iota {dimensions = array<i32: 1>} : vector<8x128xi32>
    %c64_i32 = arith.constant 64 : i32
    %132 = vector.broadcast %c64_i32 : i32 to vector<8x128xi32>
    %133 = arith.cmpi sge, %131, %132 : vector<8x128xi32>
    %c96_i32 = arith.constant 96 : i32
    %134 = vector.broadcast %c96_i32 : i32 to vector<8x128xi32>
    %135 = arith.cmpi slt, %131, %134 : vector<8x128xi32>
    %136 = arith.andi %133, %135 : vector<8x128xi1>
    %c0_64 = arith.constant 0 : index
    %c0_65 = arith.constant 0 : index
    %137 = vector.load %arg4[%c0_64, %c0_65] : memref<32x128xf32, #tpu.memory_space<vmem>>, vector<32x128xf32>
    %c0_66 = arith.constant 0 : index
    %c0_67 = arith.constant 0 : index
    %138 = vector.load %arg5[%c0_66, %c0_67] : memref<32x128xf32, #tpu.memory_space<vmem>>, vector<32x128xf32>
    %c0_68 = arith.constant 0 : index
    %c0_69 = arith.constant 0 : index
    %139 = vector.load %arg6[%c0_68, %c0_69] : memref<1x128xf32, #tpu.memory_space<vmem>>, vector<1x128xf32>
    %cst = arith.constant dense<0.000000e+00> : vector<32x128xf32>
    %140 = tpu.matmul %130, %137, %cst {dimension_numbers = #tpu.dot_dimension_numbers<[1], [0], [0], [1], [0, 0, 1, 1], [], []>} : vector<32x32xf32>, vector<32x128xf32>, vector<32x128xf32> -> vector<32x128xf32>
    %141 = vector.broadcast %139 : vector<1x128xf32> to vector<32x128xf32>
    %142 = arith.addf %140, %141 : vector<32x128xf32>
    %c0_70 = arith.constant 0 : index
    %c0_71 = arith.constant 0 : index
    %c0_72 = arith.constant 0 : index
    %143 = vector.load %arg2[%c0_70, %c0_71, %c0_72] : memref<2x8x32xf32, #tpu.memory_space<vmem>>, vector<1x8x32xf32>
    %144 = vector.shape_cast %143 : vector<1x8x32xf32> to vector<8x32xf32>
    %c0_73 = arith.constant 0 : index
    %c0_74 = arith.constant 0 : index
    %c0_75 = arith.constant 0 : index
    %145 = vector.load %arg3[%c0_73, %c0_74, %c0_75] : memref<2x8x32xf32, #tpu.memory_space<vmem>>, vector<1x8x32xf32>
    %146 = vector.shape_cast %145 : vector<1x8x32xf32> to vector<8x32xf32>
    %147 = vector.extract_strided_slice %142 {offsets = [0, 0], sizes = [8, 128], strides = [1, 1]} : vector<32x128xf32> to vector<8x128xf32>
    %cst_76 = arith.constant dense<0.000000e+00> : vector<8x128xf32>
    %148 = tpu.matmul %144, %138, %cst_76 {dimension_numbers = #tpu.dot_dimension_numbers<[1], [0], [0], [1], [0, 0, 1, 1], [], []>} : vector<8x32xf32>, vector<32x128xf32>, vector<8x128xf32> -> vector<8x128xf32>
    %149 = arith.addf %147, %148 : vector<8x128xf32>
    %150 = math.tanh %149 : vector<8x128xf32>
    %151 = arith.negf %149 : vector<8x128xf32>
    %152 = math.exp %151 : vector<8x128xf32>
    %cst_77 = arith.constant 1.000000e+00 : f32
    %153 = vector.broadcast %cst_77 : f32 to vector<8x128xf32>
    %154 = arith.addf %153, %152 : vector<8x128xf32>
    %155 = arith.divf %153, %154 : vector<8x128xf32>
    %156 = arith.select %136, %150, %155 : vector<8x128xi1>, vector<8x128xf32>
    %157 = vector.extract_strided_slice %156 {offsets = [0, 0], sizes = [8, 32], strides = [1, 1]} : vector<8x128xf32> to vector<8x32xf32>
    %158 = vector.extract_strided_slice %156 {offsets = [0, 32], sizes = [8, 32], strides = [1, 1]} : vector<8x128xf32> to vector<8x32xf32>
    %159 = vector.extract_strided_slice %156 {offsets = [0, 64], sizes = [8, 32], strides = [1, 1]} : vector<8x128xf32> to vector<8x32xf32>
    %160 = vector.extract_strided_slice %156 {offsets = [0, 96], sizes = [8, 32], strides = [1, 1]} : vector<8x128xf32> to vector<8x32xf32>
    %161 = arith.mulf %158, %146 : vector<8x32xf32>
    %162 = arith.mulf %157, %159 : vector<8x32xf32>
    %163 = arith.addf %161, %162 : vector<8x32xf32>
    %164 = math.tanh %163 : vector<8x32xf32>
    %165 = arith.mulf %160, %164 : vector<8x32xf32>
    %166 = vector.extract_strided_slice %142 {offsets = [8, 0], sizes = [8, 128], strides = [1, 1]} : vector<32x128xf32> to vector<8x128xf32>
    %cst_78 = arith.constant dense<0.000000e+00> : vector<8x128xf32>
    %167 = tpu.matmul %165, %138, %cst_78 {dimension_numbers = #tpu.dot_dimension_numbers<[1], [0], [0], [1], [0, 0, 1, 1], [], []>} : vector<8x32xf32>, vector<32x128xf32>, vector<8x128xf32> -> vector<8x128xf32>
    %168 = arith.addf %166, %167 : vector<8x128xf32>
    %169 = math.tanh %168 : vector<8x128xf32>
    %170 = arith.negf %168 : vector<8x128xf32>
    %171 = math.exp %170 : vector<8x128xf32>
    %cst_79 = arith.constant 1.000000e+00 : f32
    %172 = vector.broadcast %cst_79 : f32 to vector<8x128xf32>
    %173 = arith.addf %172, %171 : vector<8x128xf32>
    %174 = arith.divf %172, %173 : vector<8x128xf32>
    %175 = arith.select %136, %169, %174 : vector<8x128xi1>, vector<8x128xf32>
    %176 = vector.extract_strided_slice %175 {offsets = [0, 0], sizes = [8, 32], strides = [1, 1]} : vector<8x128xf32> to vector<8x32xf32>
    %177 = vector.extract_strided_slice %175 {offsets = [0, 32], sizes = [8, 32], strides = [1, 1]} : vector<8x128xf32> to vector<8x32xf32>
    %178 = vector.extract_strided_slice %175 {offsets = [0, 64], sizes = [8, 32], strides = [1, 1]} : vector<8x128xf32> to vector<8x32xf32>
    %179 = vector.extract_strided_slice %175 {offsets = [0, 96], sizes = [8, 32], strides = [1, 1]} : vector<8x128xf32> to vector<8x32xf32>
    %180 = arith.mulf %177, %163 : vector<8x32xf32>
    %181 = arith.mulf %176, %178 : vector<8x32xf32>
    %182 = arith.addf %180, %181 : vector<8x32xf32>
    %183 = math.tanh %182 : vector<8x32xf32>
    %184 = arith.mulf %179, %183 : vector<8x32xf32>
    %185 = vector.extract_strided_slice %142 {offsets = [16, 0], sizes = [8, 128], strides = [1, 1]} : vector<32x128xf32> to vector<8x128xf32>
    %cst_80 = arith.constant dense<0.000000e+00> : vector<8x128xf32>
    %186 = tpu.matmul %184, %138, %cst_80 {dimension_numbers = #tpu.dot_dimension_numbers<[1], [0], [0], [1], [0, 0, 1, 1], [], []>} : vector<8x32xf32>, vector<32x128xf32>, vector<8x128xf32> -> vector<8x128xf32>
    %187 = arith.addf %185, %186 : vector<8x128xf32>
    %188 = math.tanh %187 : vector<8x128xf32>
    %189 = arith.negf %187 : vector<8x128xf32>
    %190 = math.exp %189 : vector<8x128xf32>
    %cst_81 = arith.constant 1.000000e+00 : f32
    %191 = vector.broadcast %cst_81 : f32 to vector<8x128xf32>
    %192 = arith.addf %191, %190 : vector<8x128xf32>
    %193 = arith.divf %191, %192 : vector<8x128xf32>
    %194 = arith.select %136, %188, %193 : vector<8x128xi1>, vector<8x128xf32>
    %195 = vector.extract_strided_slice %194 {offsets = [0, 0], sizes = [8, 32], strides = [1, 1]} : vector<8x128xf32> to vector<8x32xf32>
    %196 = vector.extract_strided_slice %194 {offsets = [0, 32], sizes = [8, 32], strides = [1, 1]} : vector<8x128xf32> to vector<8x32xf32>
    %197 = vector.extract_strided_slice %194 {offsets = [0, 64], sizes = [8, 32], strides = [1, 1]} : vector<8x128xf32> to vector<8x32xf32>
    %198 = vector.extract_strided_slice %194 {offsets = [0, 96], sizes = [8, 32], strides = [1, 1]} : vector<8x128xf32> to vector<8x32xf32>
    %199 = arith.mulf %196, %182 : vector<8x32xf32>
    %200 = arith.mulf %195, %197 : vector<8x32xf32>
    %201 = arith.addf %199, %200 : vector<8x32xf32>
    %202 = math.tanh %201 : vector<8x32xf32>
    %203 = arith.mulf %198, %202 : vector<8x32xf32>
    %204 = vector.extract_strided_slice %142 {offsets = [24, 0], sizes = [8, 128], strides = [1, 1]} : vector<32x128xf32> to vector<8x128xf32>
    %cst_82 = arith.constant dense<0.000000e+00> : vector<8x128xf32>
    %205 = tpu.matmul %203, %138, %cst_82 {dimension_numbers = #tpu.dot_dimension_numbers<[1], [0], [0], [1], [0, 0, 1, 1], [], []>} : vector<8x32xf32>, vector<32x128xf32>, vector<8x128xf32> -> vector<8x128xf32>
    %206 = arith.addf %204, %205 : vector<8x128xf32>
    %207 = math.tanh %206 : vector<8x128xf32>
    %208 = arith.negf %206 : vector<8x128xf32>
    %209 = math.exp %208 : vector<8x128xf32>
    %cst_83 = arith.constant 1.000000e+00 : f32
    %210 = vector.broadcast %cst_83 : f32 to vector<8x128xf32>
    %211 = arith.addf %210, %209 : vector<8x128xf32>
    %212 = arith.divf %210, %211 : vector<8x128xf32>
    %213 = arith.select %136, %207, %212 : vector<8x128xi1>, vector<8x128xf32>
    %214 = vector.extract_strided_slice %213 {offsets = [0, 0], sizes = [8, 32], strides = [1, 1]} : vector<8x128xf32> to vector<8x32xf32>
    %215 = vector.extract_strided_slice %213 {offsets = [0, 32], sizes = [8, 32], strides = [1, 1]} : vector<8x128xf32> to vector<8x32xf32>
    %216 = vector.extract_strided_slice %213 {offsets = [0, 64], sizes = [8, 32], strides = [1, 1]} : vector<8x128xf32> to vector<8x32xf32>
    %217 = vector.extract_strided_slice %213 {offsets = [0, 96], sizes = [8, 32], strides = [1, 1]} : vector<8x128xf32> to vector<8x32xf32>
    %218 = arith.mulf %215, %201 : vector<8x32xf32>
    %219 = arith.mulf %214, %216 : vector<8x32xf32>
    %220 = arith.addf %218, %219 : vector<8x32xf32>
    %221 = math.tanh %220 : vector<8x32xf32>
    %222 = arith.mulf %217, %221 : vector<8x32xf32>
    %c0_84 = arith.constant 0 : index
    %c0_85 = arith.constant 0 : index
    %c0_86 = arith.constant 0 : index
    %223 = vector.load %arg13[%c0_84, %c0_85, %c0_86] : memref<2x8x32xf32, #tpu.memory_space<vmem>>, vector<1x8x32xf32>
    %224 = vector.shape_cast %223 : vector<1x8x32xf32> to vector<8x32xf32>
    %225 = vector.shape_cast %222 : vector<8x32xf32> to vector<1x8x32xf32>
    tpu.vector_store %arg13[%c0_84, %c0_85, %c0_86], %225 {strides = array<i32>} : memref<2x8x32xf32, #tpu.memory_space<vmem>>, vector<1x8x32xf32>,
    %c0_87 = arith.constant 0 : index
    %c0_88 = arith.constant 0 : index
    %c0_89 = arith.constant 0 : index
    %226 = vector.load %arg14[%c0_87, %c0_88, %c0_89] : memref<2x8x32xf32, #tpu.memory_space<vmem>>, vector<1x8x32xf32>
    %227 = vector.shape_cast %226 : vector<1x8x32xf32> to vector<8x32xf32>
    %228 = vector.shape_cast %220 : vector<8x32xf32> to vector<1x8x32xf32>
    tpu.vector_store %arg14[%c0_87, %c0_88, %c0_89], %228 {strides = array<i32>} : memref<2x8x32xf32, #tpu.memory_space<vmem>>, vector<1x8x32xf32>,
    %229 = tpu.concatenate %165, %184, %203, %222 in 0 : vector<8x32xf32>, vector<8x32xf32>, vector<8x32xf32>, vector<8x32xf32> -> vector<32x32xf32>
    %c0_90 = arith.constant 0 : index
    %c0_91 = arith.constant 0 : index
    %230 = vector.load %arg7[%c0_90, %c0_91] : memref<32x128xf32, #tpu.memory_space<vmem>>, vector<32x128xf32>
    %c0_92 = arith.constant 0 : index
    %c0_93 = arith.constant 0 : index
    %231 = vector.load %arg8[%c0_92, %c0_93] : memref<32x128xf32, #tpu.memory_space<vmem>>, vector<32x128xf32>
    %c0_94 = arith.constant 0 : index
    %c0_95 = arith.constant 0 : index
    %232 = vector.load %arg9[%c0_94, %c0_95] : memref<1x128xf32, #tpu.memory_space<vmem>>, vector<1x128xf32>
    %cst_96 = arith.constant dense<0.000000e+00> : vector<32x128xf32>
    %233 = tpu.matmul %229, %230, %cst_96 {dimension_numbers = #tpu.dot_dimension_numbers<[1], [0], [0], [1], [0, 0, 1, 1], [], []>} : vector<32x32xf32>, vector<32x128xf32>, vector<32x128xf32> -> vector<32x128xf32>
    %234 = vector.broadcast %232 : vector<1x128xf32> to vector<32x128xf32>
    %235 = arith.addf %233, %234 : vector<32x128xf32>
    %c1_97 = arith.constant 1 : index
    %c0_98 = arith.constant 0 : index
    %c0_99 = arith.constant 0 : index
    %236 = vector.load %arg2[%c1_97, %c0_98, %c0_99] : memref<2x8x32xf32, #tpu.memory_space<vmem>>, vector<1x8x32xf32>
    %237 = vector.shape_cast %236 : vector<1x8x32xf32> to vector<8x32xf32>
    %c1_100 = arith.constant 1 : index
    %c0_101 = arith.constant 0 : index
    %c0_102 = arith.constant 0 : index
    %238 = vector.load %arg3[%c1_100, %c0_101, %c0_102] : memref<2x8x32xf32, #tpu.memory_space<vmem>>, vector<1x8x32xf32>
    %239 = vector.shape_cast %238 : vector<1x8x32xf32> to vector<8x32xf32>
    %240 = vector.extract_strided_slice %235 {offsets = [0, 0], sizes = [8, 128], strides = [1, 1]} : vector<32x128xf32> to vector<8x128xf32>
    %cst_103 = arith.constant dense<0.000000e+00> : vector<8x128xf32>
    %241 = tpu.matmul %237, %231, %cst_103 {dimension_numbers = #tpu.dot_dimension_numbers<[1], [0], [0], [1], [0, 0, 1, 1], [], []>} : vector<8x32xf32>, vector<32x128xf32>, vector<8x128xf32> -> vector<8x128xf32>
    %242 = arith.addf %240, %241 : vector<8x128xf32>
    %243 = math.tanh %242 : vector<8x128xf32>
    %244 = arith.negf %242 : vector<8x128xf32>
    %245 = math.exp %244 : vector<8x128xf32>
    %cst_104 = arith.constant 1.000000e+00 : f32
    %246 = vector.broadcast %cst_104 : f32 to vector<8x128xf32>
    %247 = arith.addf %246, %245 : vector<8x128xf32>
    %248 = arith.divf %246, %247 : vector<8x128xf32>
    %249 = arith.select %136, %243, %248 : vector<8x128xi1>, vector<8x128xf32>
    %250 = vector.extract_strided_slice %249 {offsets = [0, 0], sizes = [8, 32], strides = [1, 1]} : vector<8x128xf32> to vector<8x32xf32>
    %251 = vector.extract_strided_slice %249 {offsets = [0, 32], sizes = [8, 32], strides = [1, 1]} : vector<8x128xf32> to vector<8x32xf32>
    %252 = vector.extract_strided_slice %249 {offsets = [0, 64], sizes = [8, 32], strides = [1, 1]} : vector<8x128xf32> to vector<8x32xf32>
    %253 = vector.extract_strided_slice %249 {offsets = [0, 96], sizes = [8, 32], strides = [1, 1]} : vector<8x128xf32> to vector<8x32xf32>
    %254 = arith.mulf %251, %239 : vector<8x32xf32>
    %255 = arith.mulf %250, %252 : vector<8x32xf32>
    %256 = arith.addf %254, %255 : vector<8x32xf32>
    %257 = math.tanh %256 : vector<8x32xf32>
    %258 = arith.mulf %253, %257 : vector<8x32xf32>
    %259 = vector.extract_strided_slice %235 {offsets = [8, 0], sizes = [8, 128], strides = [1, 1]} : vector<32x128xf32> to vector<8x128xf32>
    %cst_105 = arith.constant dense<0.000000e+00> : vector<8x128xf32>
    %260 = tpu.matmul %258, %231, %cst_105 {dimension_numbers = #tpu.dot_dimension_numbers<[1], [0], [0], [1], [0, 0, 1, 1], [], []>} : vector<8x32xf32>, vector<32x128xf32>, vector<8x128xf32> -> vector<8x128xf32>
    %261 = arith.addf %259, %260 : vector<8x128xf32>
    %262 = math.tanh %261 : vector<8x128xf32>
    %263 = arith.negf %261 : vector<8x128xf32>
    %264 = math.exp %263 : vector<8x128xf32>
    %cst_106 = arith.constant 1.000000e+00 : f32
    %265 = vector.broadcast %cst_106 : f32 to vector<8x128xf32>
    %266 = arith.addf %265, %264 : vector<8x128xf32>
    %267 = arith.divf %265, %266 : vector<8x128xf32>
    %268 = arith.select %136, %262, %267 : vector<8x128xi1>, vector<8x128xf32>
    %269 = vector.extract_strided_slice %268 {offsets = [0, 0], sizes = [8, 32], strides = [1, 1]} : vector<8x128xf32> to vector<8x32xf32>
    %270 = vector.extract_strided_slice %268 {offsets = [0, 32], sizes = [8, 32], strides = [1, 1]} : vector<8x128xf32> to vector<8x32xf32>
    %271 = vector.extract_strided_slice %268 {offsets = [0, 64], sizes = [8, 32], strides = [1, 1]} : vector<8x128xf32> to vector<8x32xf32>
    %272 = vector.extract_strided_slice %268 {offsets = [0, 96], sizes = [8, 32], strides = [1, 1]} : vector<8x128xf32> to vector<8x32xf32>
    %273 = arith.mulf %270, %256 : vector<8x32xf32>
    %274 = arith.mulf %269, %271 : vector<8x32xf32>
    %275 = arith.addf %273, %274 : vector<8x32xf32>
    %276 = math.tanh %275 : vector<8x32xf32>
    %277 = arith.mulf %272, %276 : vector<8x32xf32>
    %278 = vector.extract_strided_slice %235 {offsets = [16, 0], sizes = [8, 128], strides = [1, 1]} : vector<32x128xf32> to vector<8x128xf32>
    %cst_107 = arith.constant dense<0.000000e+00> : vector<8x128xf32>
    %279 = tpu.matmul %277, %231, %cst_107 {dimension_numbers = #tpu.dot_dimension_numbers<[1], [0], [0], [1], [0, 0, 1, 1], [], []>} : vector<8x32xf32>, vector<32x128xf32>, vector<8x128xf32> -> vector<8x128xf32>
    %280 = arith.addf %278, %279 : vector<8x128xf32>
    %281 = math.tanh %280 : vector<8x128xf32>
    %282 = arith.negf %280 : vector<8x128xf32>
    %283 = math.exp %282 : vector<8x128xf32>
    %cst_108 = arith.constant 1.000000e+00 : f32
    %284 = vector.broadcast %cst_108 : f32 to vector<8x128xf32>
    %285 = arith.addf %284, %283 : vector<8x128xf32>
    %286 = arith.divf %284, %285 : vector<8x128xf32>
    %287 = arith.select %136, %281, %286 : vector<8x128xi1>, vector<8x128xf32>
    %288 = vector.extract_strided_slice %287 {offsets = [0, 0], sizes = [8, 32], strides = [1, 1]} : vector<8x128xf32> to vector<8x32xf32>
    %289 = vector.extract_strided_slice %287 {offsets = [0, 32], sizes = [8, 32], strides = [1, 1]} : vector<8x128xf32> to vector<8x32xf32>
    %290 = vector.extract_strided_slice %287 {offsets = [0, 64], sizes = [8, 32], strides = [1, 1]} : vector<8x128xf32> to vector<8x32xf32>
    %291 = vector.extract_strided_slice %287 {offsets = [0, 96], sizes = [8, 32], strides = [1, 1]} : vector<8x128xf32> to vector<8x32xf32>
    %292 = arith.mulf %289, %275 : vector<8x32xf32>
    %293 = arith.mulf %288, %290 : vector<8x32xf32>
    %294 = arith.addf %292, %293 : vector<8x32xf32>
    %295 = math.tanh %294 : vector<8x32xf32>
    %296 = arith.mulf %291, %295 : vector<8x32xf32>
    %297 = vector.extract_strided_slice %235 {offsets = [24, 0], sizes = [8, 128], strides = [1, 1]} : vector<32x128xf32> to vector<8x128xf32>
    %cst_109 = arith.constant dense<0.000000e+00> : vector<8x128xf32>
    %298 = tpu.matmul %296, %231, %cst_109 {dimension_numbers = #tpu.dot_dimension_numbers<[1], [0], [0], [1], [0, 0, 1, 1], [], []>} : vector<8x32xf32>, vector<32x128xf32>, vector<8x128xf32> -> vector<8x128xf32>
    %299 = arith.addf %297, %298 : vector<8x128xf32>
    %300 = math.tanh %299 : vector<8x128xf32>
    %301 = arith.negf %299 : vector<8x128xf32>
    %302 = math.exp %301 : vector<8x128xf32>
    %cst_110 = arith.constant 1.000000e+00 : f32
    %303 = vector.broadcast %cst_110 : f32 to vector<8x128xf32>
    %304 = arith.addf %303, %302 : vector<8x128xf32>
    %305 = arith.divf %303, %304 : vector<8x128xf32>
    %306 = arith.select %136, %300, %305 : vector<8x128xi1>, vector<8x128xf32>
    %307 = vector.extract_strided_slice %306 {offsets = [0, 0], sizes = [8, 32], strides = [1, 1]} : vector<8x128xf32> to vector<8x32xf32>
    %308 = vector.extract_strided_slice %306 {offsets = [0, 32], sizes = [8, 32], strides = [1, 1]} : vector<8x128xf32> to vector<8x32xf32>
    %309 = vector.extract_strided_slice %306 {offsets = [0, 64], sizes = [8, 32], strides = [1, 1]} : vector<8x128xf32> to vector<8x32xf32>
    %310 = vector.extract_strided_slice %306 {offsets = [0, 96], sizes = [8, 32], strides = [1, 1]} : vector<8x128xf32> to vector<8x32xf32>
    %311 = arith.mulf %308, %294 : vector<8x32xf32>
    %312 = arith.mulf %307, %309 : vector<8x32xf32>
    %313 = arith.addf %311, %312 : vector<8x32xf32>
    %314 = math.tanh %313 : vector<8x32xf32>
    %315 = arith.mulf %310, %314 : vector<8x32xf32>
    %c1_111 = arith.constant 1 : index
    %c0_112 = arith.constant 0 : index
    %c0_113 = arith.constant 0 : index
    %316 = vector.load %arg13[%c1_111, %c0_112, %c0_113] : memref<2x8x32xf32, #tpu.memory_space<vmem>>, vector<1x8x32xf32>
    %317 = vector.shape_cast %316 : vector<1x8x32xf32> to vector<8x32xf32>
    %318 = vector.shape_cast %315 : vector<8x32xf32> to vector<1x8x32xf32>
    tpu.vector_store %arg13[%c1_111, %c0_112, %c0_113], %318 {strides = array<i32>} : memref<2x8x32xf32, #tpu.memory_space<vmem>>, vector<1x8x32xf32>,
    %c1_114 = arith.constant 1 : index
    %c0_115 = arith.constant 0 : index
    %c0_116 = arith.constant 0 : index
    %319 = vector.load %arg14[%c1_114, %c0_115, %c0_116] : memref<2x8x32xf32, #tpu.memory_space<vmem>>, vector<1x8x32xf32>
    %320 = vector.shape_cast %319 : vector<1x8x32xf32> to vector<8x32xf32>
    %321 = vector.shape_cast %313 : vector<8x32xf32> to vector<1x8x32xf32>
    tpu.vector_store %arg14[%c1_114, %c0_115, %c0_116], %321 {strides = array<i32>} : memref<2x8x32xf32, #tpu.memory_space<vmem>>, vector<1x8x32xf32>,
    %322 = tpu.concatenate %258, %277, %296, %315 in 1 : vector<8x32xf32>, vector<8x32xf32>, vector<8x32xf32>, vector<8x32xf32> -> vector<8x128xf32>
    %c0_117 = arith.constant 0 : index
    %c0_118 = arith.constant 0 : index
    %323 = vector.load %arg10[%c0_117, %c0_118] : memref<128x64xf32, #tpu.memory_space<vmem>>, vector<128x64xf32>
    %cst_119 = arith.constant dense<0.000000e+00> : vector<8x64xf32>
    %324 = tpu.matmul %322, %323, %cst_119 {dimension_numbers = #tpu.dot_dimension_numbers<[1], [0], [0], [1], [0, 0, 1, 1], [], []>} : vector<8x128xf32>, vector<128x64xf32>, vector<8x64xf32> -> vector<8x64xf32>
    %c0_120 = arith.constant 0 : index
    %c0_121 = arith.constant 0 : index
    %325 = vector.load %arg11[%c0_120, %c0_121] : memref<1x64xf32, #tpu.memory_space<vmem>>, vector<1x64xf32>
    %326 = vector.broadcast %325 : vector<1x64xf32> to vector<8x64xf32>
    %327 = arith.addf %324, %326 : vector<8x64xf32>
    %c0_122 = arith.constant 0 : index
    %c0_123 = arith.constant 0 : index
    %328 = vector.load %arg12[%c0_122, %c0_123] : memref<8x64xf32, #tpu.memory_space<vmem>>, vector<8x64xf32>
    tpu.vector_store %arg12[%c0_122, %c0_123], %327 {strides = array<i32>} : memref<8x64xf32, #tpu.memory_space<vmem>>, vector<8x64xf32>,
    return
  }
}

</mosaic_0001>

<llo_original>
// kernel: tpu_custom_call.1
$region0: #{tpu_custom_call.1}
  #allocation0 [shape = 'u32[]', space=smem, size = 0x4, offset = 0x4, fixed_abs, tag = 'smem constant byte address 0x4 - core index']
  #allocation1 [shape = 'u32[144,128]{1,0:T(1,128)}', space=vmem, size = 0x12000, scoped, tag = 'internal scratch']
  %s0 = inlined_call_operand.vmem [shape: s32[32], index: 0, kind: input, shape index: {}]
  %s1 = inlined_call_operand.vmem [shape: f32[64,1,32], index: 1, kind: input, shape index: {}]
  %s2 = inlined_call_operand.vmem [shape: f32[2,8,32], index: 2, kind: input, shape index: {}]
  %s3 = inlined_call_operand.vmem [shape: f32[2,8,32], index: 3, kind: input, shape index: {}]
  %s4 = inlined_call_operand.vmem [shape: f32[32,128], index: 4, kind: input, shape index: {}]
  %s5 = inlined_call_operand.vmem [shape: f32[32,128], index: 5, kind: input, shape index: {}]
  %s6 = inlined_call_operand.vmem [shape: f32[1,128], index: 6, kind: input, shape index: {}]
  %s7 = inlined_call_operand.vmem [shape: f32[32,128], index: 7, kind: input, shape index: {}]
  %s8 = inlined_call_operand.vmem [shape: f32[32,128], index: 8, kind: input, shape index: {}]
  %s9 = inlined_call_operand.vmem [shape: f32[1,128], index: 9, kind: input, shape index: {}]
  %s10 = inlined_call_operand.vmem [shape: f32[128,64], index: 10, kind: input, shape index: {}]
  %s11 = inlined_call_operand.vmem [shape: f32[1,64], index: 11, kind: input, shape index: {}]
  %s12 = inlined_call_operand.hbm [shape: f32[8,64], index: 12, kind: output, shape index: {0}]
  %s13 = inlined_call_operand.hbm [shape: f32[2,8,32], index: 13, kind: output, shape index: {1}]
  %s14 = inlined_call_operand.hbm [shape: f32[2,8,32], index: 14, kind: output, shape index: {2}]
  %15 = xla_tuple %s12, %s13, %s14
  %s16 = sld [smem:[#allocation0]]
  $region78: #{tpu_custom_call.1} parent=0
    _
  %s18 = ssub.s32 1, %s16
  %s19 = scalar_select 0, %s18, %s16
  $region1: #{tpu_custom_call.1} parent=0
    #allocation2 [shape = 'u8[512]{0}', space=smem, size = 0x200, scoped, tag = 'input window, operand 0, single buffered']
    #allocation3 [shape = 's32[1]{0}', space=sflag, size = 0x4, scoped, tag = 'scoped memory for tpu_custom_call.1']
    #allocation4 [shape = 's32[1]{0}', space=sflag, size = 0x4, scoped, tag = 'scoped memory for tpu_custom_call.1']
    #allocation5 [shape = 'u8[4096]{0}', space=vmem, size = 0x1000, scoped, tag = 'output window, operand 0, single buffered']
    #allocation6 [shape = 'u8[8192]{0}', space=vmem, size = 0x2000, scoped, tag = 'output window, operand 1, single buffered']
    #allocation7 [shape = 's32[1]{0}', space=sflag, size = 0x4, scoped, tag = 'scoped memory for tpu_custom_call.1']
    #allocation8 [shape = 'u8[8192]{0}', space=vmem, size = 0x2000, scoped, tag = 'output window, operand 2, single buffered']
    %20 = vsyncpa [#allocation4], 0
    %21 = vsyncpa [#allocation3], 0
    %22 = vsyncpa [#allocation7], 0
    // Predicated region
    $region2: #{tpu_custom_call.1} parent=1 // pred_check
      _
    $region3: #{tpu_custom_call.1} parent=1 // pred_check_branch
      %24 = sbr.rel (0) target = $region5
    $region4: #{tpu_custom_call.1} parent=1 // pred_region
      %s26 = ssub.s32 16, 16
      %27 = vsyncadd [#allocation4], %s26
      %s29 = sshll.u32 %s0, 4
      %s30 = int_to_ptr.vmem [resolvable:$true] %s29
      %32 = dma.vmem_to_smem %s30, 16, [#allocation2], [#allocation4]
    $region5: #{tpu_custom_call.1} parent=1 // pred_fallthru
      _
    // Predicated region
    $region6: #{tpu_custom_call.1} parent=1 // pred_check
      _
    $region7: #{tpu_custom_call.1} parent=1 // pred_check_branch
      %34 = sbr.rel (0) target = $region9
    $region8: #{tpu_custom_call.1} parent=1 // pred_region
      _
    $region9: #{tpu_custom_call.1} parent=1 // pred_fallthru
      _
    // Predicated region
    $region10: #{tpu_custom_call.1} parent=1 // pred_check
      _
    $region11: #{tpu_custom_call.1} parent=1 // pred_check_branch
      %36 = sbr.rel (0) target = $region13
    $region12: #{tpu_custom_call.1} parent=1 // pred_region
      _
    $region13: #{tpu_custom_call.1} parent=1 // pred_fallthru
      _
    // Predicated region
    $region14: #{tpu_custom_call.1} parent=1 // pred_check
      _
    $region15: #{tpu_custom_call.1} parent=1 // pred_check_branch
      %38 = sbr.rel (0) target = $region17
    $region16: #{tpu_custom_call.1} parent=1 // pred_region
      _
    $region17: #{tpu_custom_call.1} parent=1 // pred_fallthru
      _
    // Predicated region
    $region18: #{tpu_custom_call.1} parent=1 // pred_check
      _
    $region19: #{tpu_custom_call.1} parent=1 // pred_check_branch
      %40 = sbr.rel (0) target = $region21
    $region20: #{tpu_custom_call.1} parent=1 // pred_region
      _
    $region21: #{tpu_custom_call.1} parent=1 // pred_fallthru
      _
    // Predicated region
    $region22: #{tpu_custom_call.1} parent=1 // pred_check
      _
    $region23: #{tpu_custom_call.1} parent=1 // pred_check_branch
      %42 = sbr.rel (0) target = $region25
    $region24: #{tpu_custom_call.1} parent=1 // pred_region
      _
    $region25: #{tpu_custom_call.1} parent=1 // pred_fallthru
      _
    // Predicated region
    $region26: #{tpu_custom_call.1} parent=1 // pred_check
      _
    $region27: #{tpu_custom_call.1} parent=1 // pred_check_branch
      %44 = sbr.rel (0) target = $region29
    $region28: #{tpu_custom_call.1} parent=1 // pred_region
      _
    $region29: #{tpu_custom_call.1} parent=1 // pred_fallthru
      _
    // Predicated region
    $region30: #{tpu_custom_call.1} parent=1 // pred_check
      _
    $region31: #{tpu_custom_call.1} parent=1 // pred_check_branch
      %46 = sbr.rel (0) target = $region33
    $region32: #{tpu_custom_call.1} parent=1 // pred_region
      _
    $region33: #{tpu_custom_call.1} parent=1 // pred_fallthru
      _
    // Predicated region
    $region34: #{tpu_custom_call.1} parent=1 // pred_check
      _
    $region35: #{tpu_custom_call.1} parent=1 // pred_check_branch
      %48 = sbr.rel (0) target = $region37
    $region36: #{tpu_custom_call.1} parent=1 // pred_region
      _
    $region37: #{tpu_custom_call.1} parent=1 // pred_fallthru
      _
    // Predicated region
    $region38: #{tpu_custom_call.1} parent=1 // pred_check
      _
    $region39: #{tpu_custom_call.1} parent=1 // pred_check_branch
      %50 = sbr.rel (0) target = $region41
    $region40: #{tpu_custom_call.1} parent=1 // pred_region
      _
    $region41: #{tpu_custom_call.1} parent=1 // pred_fallthru
      _
    // Predicated region
    $region42: #{tpu_custom_call.1} parent=1 // pred_check
      _
    $region43: #{tpu_custom_call.1} parent=1 // pred_check_branch
      %52 = sbr.rel (0) target = $region45
    $region44: #{tpu_custom_call.1} parent=1 // pred_region
      _
    $region45: #{tpu_custom_call.1} parent=1 // pred_fallthru
      _
    // Predicated region
    $region46: #{tpu_custom_call.1} parent=1 // pred_check
      _
    $region47: #{tpu_custom_call.1} parent=1 // pred_check_branch
      %54 = sbr.rel (0) target = $region49
    $region48: #{tpu_custom_call.1} parent=1 // pred_region
      _
    $region49: #{tpu_custom_call.1} parent=1 // pred_fallthru
      _
    // Predicated region
    $region50: #{tpu_custom_call.1} parent=1 // pred_check
      _
    $region51: #{tpu_custom_call.1} parent=1 // pred_check_branch
      %56 = sbr.rel (0) target = $region53
    $region52: #{tpu_custom_call.1} parent=1 // pred_region
      %57 = dma.done [#allocation4], 16
    $region53: #{tpu_custom_call.1} parent=1 // pred_fallthru
      _
    %58 = sfence
    %s59 = sld [smem:[#allocation2]]
    %s60 = scalar_lea.vmem %s1, %s59
    %v61 = vld [vmem:[%s60] sm:$0x1]
    %s62 = sld [smem:[#allocation2 + $0x1]]
    %s63 = scalar_lea.vmem %s1, %s62
    %v64 = vld [vmem:[%s63] sm:$0x1]
    %s65 = sld [smem:[#allocation2 + $0x2]]
    %s66 = scalar_lea.vmem %s1, %s65
    %v67 = vld [vmem:[%s66] sm:$0x1]
    %s68 = sld [smem:[#allocation2 + $0x3]]
    %s69 = scalar_lea.vmem %s1, %s68
    %v70 = vld [vmem:[%s69] sm:$0x1]
    %s71 = sld [smem:[#allocation2 + $0x4]]
    %s72 = scalar_lea.vmem %s1, %s71
    %v73 = vld [vmem:[%s72] sm:$0x1]
    %s74 = sld [smem:[#allocation2 + $0x5]]
    %s75 = scalar_lea.vmem %s1, %s74
    %v76 = vld [vmem:[%s75] sm:$0x1]
    %s77 = sld [smem:[#allocation2 + $0x6]]
    %s78 = scalar_lea.vmem %s1, %s77
    %v79 = vld [vmem:[%s78] sm:$0x1]
    %s80 = sld [smem:[#allocation2 + $0x7]]
    %s81 = scalar_lea.vmem %s1, %s80
    %v82 = vld [vmem:[%s81] sm:$0x1]
    %s83 = sld [smem:[#allocation2 + $0x8]]
    %s84 = scalar_lea.vmem %s1, %s83
    %v85 = vld [vmem:[%s84] sm:$0x1]
    %s86 = sld [smem:[#allocation2 + $0x9]]
    %s87 = scalar_lea.vmem %s1, %s86
    %v88 = vld [vmem:[%s87] sm:$0x1]
    %s89 = sld [smem:[#allocation2 + $0xa]]
    %s90 = scalar_lea.vmem %s1, %s89
    %v91 = vld [vmem:[%s90] sm:$0x1]
    %s92 = sld [smem:[#allocation2 + $0xb]]
    %s93 = scalar_lea.vmem %s1, %s92
    %v94 = vld [vmem:[%s93] sm:$0x1]
    %s95 = sld [smem:[#allocation2 + $0xc]]
    %s96 = scalar_lea.vmem %s1, %s95
    %v97 = vld [vmem:[%s96] sm:$0x1]
    %s98 = sld [smem:[#allocation2 + $0xd]]
    %s99 = scalar_lea.vmem %s1, %s98
    %v100 = vld [vmem:[%s99] sm:$0x1]
    %s101 = sld [smem:[#allocation2 + $0xe]]
    %s102 = scalar_lea.vmem %s1, %s101
    %v103 = vld [vmem:[%s102] sm:$0x1]
    %s104 = sld [smem:[#allocation2 + $0xf]]
    %s105 = scalar_lea.vmem %s1, %s104
    %v106 = vld [vmem:[%s105] sm:$0x1]
    %s107 = sld [smem:[#allocation2 + $0x10]]
    %s108 = scalar_lea.vmem %s1, %s107
    %v109 = vld [vmem:[%s108] sm:$0x1]
    %s110 = sld [smem:[#allocation2 + $0x11]]
    %s111 = scalar_lea.vmem %s1, %s110
    %v112 = vld [vmem:[%s111] sm:$0x1]
    %s113 = sld [smem:[#allocation2 + $0x12]]
    %s114 = scalar_lea.vmem %s1, %s113
    %v115 = vld [vmem:[%s114] sm:$0x1]
    %s116 = sld [smem:[#allocation2 + $0x13]]
    %s117 = scalar_lea.vmem %s1, %s116
    %v118 = vld [vmem:[%s117] sm:$0x1]
    %s119 = sld [smem:[#allocation2 + $0x14]]
    %s120 = scalar_lea.vmem %s1, %s119
    %v121 = vld [vmem:[%s120] sm:$0x1]
    %s122 = sld [smem:[#allocation2 + $0x15]]
    %s123 = scalar_lea.vmem %s1, %s122
    %v124 = vld [vmem:[%s123] sm:$0x1]
    %s125 = sld [smem:[#allocation2 + $0x16]]
    %s126 = scalar_lea.vmem %s1, %s125
    %v127 = vld [vmem:[%s126] sm:$0x1]
    %s128 = sld [smem:[#allocation2 + $0x17]]
    %s129 = scalar_lea.vmem %s1, %s128
    %v130 = vld [vmem:[%s129] sm:$0x1]
    %s131 = sld [smem:[#allocation2 + $0x18]]
    %s132 = scalar_lea.vmem %s1, %s131
    %v133 = vld [vmem:[%s132] sm:$0x1]
    %s134 = sld [smem:[#allocation2 + $0x19]]
    %s135 = scalar_lea.vmem %s1, %s134
    %v136 = vld [vmem:[%s135] sm:$0x1]
    %s137 = sld [smem:[#allocation2 + $0x1a]]
    %s138 = scalar_lea.vmem %s1, %s137
    %v139 = vld [vmem:[%s138] sm:$0x1]
    %s140 = sld [smem:[#allocation2 + $0x1b]]
    %s141 = scalar_lea.vmem %s1, %s140
    %v142 = vld [vmem:[%s141] sm:$0x1]
    %s143 = sld [smem:[#allocation2 + $0x1c]]
    %s144 = scalar_lea.vmem %s1, %s143
    %v145 = vld [vmem:[%s144] sm:$0x1]
    %s146 = sld [smem:[#allocation2 + $0x1d]]
    %s147 = scalar_lea.vmem %s1, %s146
    %v148 = vld [vmem:[%s147] sm:$0x1]
    %s149 = sld [smem:[#allocation2 + $0x1e]]
    %s150 = scalar_lea.vmem %s1, %s149
    %v151 = vld [vmem:[%s150] sm:$0x1]
    %s152 = sld [smem:[#allocation2 + $0x1f]]
    %s153 = scalar_lea.vmem %s1, %s152
    %v154 = vld [vmem:[%s153] sm:$0x1]
    %v156 = vlaneseq
    %v157 = vshrl.u32 %v156, 7
    %v158 = vsub.s32 0, %v157
    %v159 = vrot.slane %v64, %v158
    %v162 = vlaneseq
    %v163 = vshrl.u32 %v162, 7
    %v164 = vsub.s32 0, %v163
    %v165 = vrot.slane %v67, %v164
    %v168 = vlaneseq
    %v169 = vshrl.u32 %v168, 7
    %v170 = vsub.s32 0, %v169
    %v171 = vrot.slane %v70, %v170
    %v174 = vlaneseq
    %v175 = vshrl.u32 %v174, 7
    %v176 = vsub.s32 0, %v175
    %v177 = vrot.slane %v73, %v176
    %v180 = vlaneseq
    %v181 = vshrl.u32 %v180, 7
    %v182 = vsub.s32 0, %v181
    %v183 = vrot.slane %v76, %v182
    %v186 = vlaneseq
    %v187 = vshrl.u32 %v186, 7
    %v188 = vsub.s32 0, %v187
    %v189 = vrot.slane %v79, %v188
    %v192 = vlaneseq
    %v193 = vshrl.u32 %v192, 7
    %v194 = vsub.s32 0, %v193
    %v195 = vrot.slane %v82, %v194
    %v198 = vlaneseq
    %v199 = vshrl.u32 %v198, 7
    %v200 = vsub.s32 0, %v199
    %v201 = vrot.slane %v88, %v200
    %v204 = vlaneseq
    %v205 = vshrl.u32 %v204, 7
    %v206 = vsub.s32 0, %v205
    %v207 = vrot.slane %v91, %v206
    %v210 = vlaneseq
    %v211 = vshrl.u32 %v210, 7
    %v212 = vsub.s32 0, %v211
    %v213 = vrot.slane %v94, %v212
    %v216 = vlaneseq
    %v217 = vshrl.u32 %v216, 7
    %v218 = vsub.s32 0, %v217
    %v219 = vrot.slane %v97, %v218
    %v222 = vlaneseq
    %v223 = vshrl.u32 %v222, 7
    %v224 = vsub.s32 0, %v223
    %v225 = vrot.slane %v100, %v224
    %v228 = vlaneseq
    %v229 = vshrl.u32 %v228, 7
    %v230 = vsub.s32 0, %v229
    %v231 = vrot.slane %v103, %v230
    %v234 = vlaneseq
    %v235 = vshrl.u32 %v234, 7
    %v236 = vsub.s32 0, %v235
    %v237 = vrot.slane %v106, %v236
    %vm239 = vcmask 1040384
    %v240 = vsel %vm239, %v61, %v159
    %vm241 = vcmask 1041408
    %v242 = vsel %vm241, %v240, %v165
    %vm243 = vcmask 1042432
    %v244 = vsel %vm243, %v242, %v171
    %vm245 = vcmask 1043456
    %v246 = vsel %vm245, %v244, %v177
    %vm247 = vcmask 1044480
    %v248 = vsel %vm247, %v246, %v183
    %vm249 = vcmask 1045504
    %v250 = vsel %vm249, %v248, %v189
    %vm251 = vcmask 1046528
    %v252 = vsel %vm251, %v250, %v195
    %v253 = vsel %vm239, %v85, %v201
    %v254 = vsel %vm241, %v253, %v207
    %v255 = vsel %vm243, %v254, %v213
    %v256 = vsel %vm245, %v255, %v219
    %v257 = vsel %vm247, %v256, %v225
    %v258 = vsel %vm249, %v257, %v231
    %v259 = vsel %vm251, %v258, %v237
    %v261 = vlaneseq
    %v262 = vshrl.u32 %v261, 7
    %v263 = vsub.s32 0, %v262
    %v264 = vrot.slane %v112, %v263
    %v267 = vlaneseq
    %v268 = vshrl.u32 %v267, 7
    %v269 = vsub.s32 0, %v268
    %v270 = vrot.slane %v115, %v269
    %v273 = vlaneseq
    %v274 = vshrl.u32 %v273, 7
    %v275 = vsub.s32 0, %v274
    %v276 = vrot.slane %v118, %v275
    %v279 = vlaneseq
    %v280 = vshrl.u32 %v279, 7
    %v281 = vsub.s32 0, %v280
    %v282 = vrot.slane %v121, %v281
    %v285 = vlaneseq
    %v286 = vshrl.u32 %v285, 7
    %v287 = vsub.s32 0, %v286
    %v288 = vrot.slane %v124, %v287
    %v291 = vlaneseq
    %v292 = vshrl.u32 %v291, 7
    %v293 = vsub.s32 0, %v292
    %v294 = vrot.slane %v127, %v293
    %v297 = vlaneseq
    %v298 = vshrl.u32 %v297, 7
    %v299 = vsub.s32 0, %v298
    %v300 = vrot.slane %v130, %v299
    %v303 = vlaneseq
    %v304 = vshrl.u32 %v303, 7
    %v305 = vsub.s32 0, %v304
    %v306 = vrot.slane %v136, %v305
    %v309 = vlaneseq
    %v310 = vshrl.u32 %v309, 7
    %v311 = vsub.s32 0, %v310
    %v312 = vrot.slane %v139, %v311
    %v315 = vlaneseq
    %v316 = vshrl.u32 %v315, 7
    %v317 = vsub.s32 0, %v316
    %v318 = vrot.slane %v142, %v317
    %v321 = vlaneseq
    %v322 = vshrl.u32 %v321, 7
    %v323 = vsub.s32 0, %v322
    %v324 = vrot.slane %v145, %v323
    %v327 = vlaneseq
    %v328 = vshrl.u32 %v327, 7
    %v329 = vsub.s32 0, %v328
    %v330 = vrot.slane %v148, %v329
    %v333 = vlaneseq
    %v334 = vshrl.u32 %v333, 7
    %v335 = vsub.s32 0, %v334
    %v336 = vrot.slane %v151, %v335
    %v339 = vlaneseq
    %v340 = vshrl.u32 %v339, 7
    %v341 = vsub.s32 0, %v340
    %v342 = vrot.slane %v154, %v341
    %v344 = vsel %vm239, %v109, %v264
    %v345 = vsel %vm241, %v344, %v270
    %v346 = vsel %vm243, %v345, %v276
    %v347 = vsel %vm245, %v346, %v282
    %v348 = vsel %vm247, %v347, %v288
    %v349 = vsel %vm249, %v348, %v294
    %v350 = vsel %vm251, %v349, %v300
    %v351 = vsel %vm239, %v133, %v306
    %v352 = vsel %vm241, %v351, %v312
    %v353 = vsel %vm243, %v352, %v318
    %v354 = vsel %vm245, %v353, %v324
    %v355 = vsel %vm247, %v354, %v330
    %v356 = vsel %vm249, %v355, %v336
    %v357 = vsel %vm251, %v356, %v342
    %v358 = vlaneseq
    %v359 = vand.u32 %v358, 127
    %vm360 = vcmp.ge.s32.totalorder %v359, 64
    %vm361 = vcmp.lt.s32.totalorder %v359, 96
    %vm362 = vmand %vm360, %vm361
    %v363 = vld [vmem:[%s4] sm:$0xff]
    %v364 = vld [vmem:[%s4 + $0x8] sm:$0xff]
    %v365 = vld [vmem:[%s4 + $0x10] sm:$0xff]
    %v366 = vld [vmem:[%s4 + $0x18] sm:$0xff]
    %v367 = vld [vmem:[%s5] sm:$0xff]
    %v368 = vld [vmem:[%s5 + $0x8] sm:$0xff]
    %v369 = vld [vmem:[%s5 + $0x10] sm:$0xff]
    %v370 = vld [vmem:[%s5 + $0x18] sm:$0xff]
    %v371 = vld [vmem:[%s6] sm:$0x1]
    %v373 = vlaneseq
    %v374 = vshrl.u32 %v373, 7
    %v375 = vsub.s32 0, %v374
    %v376 = vrot.slane %v371, %v375
    %vm378 = vcmask 261120
    %v380 = vsel %vm378, %v252, 0
    %v383 = vsel %vm378, %v259, 0
    %v386 = vsel %vm378, %v350, 0
    %v389 = vsel %vm378, %v357, 0
    %391 = vmatprep.subr.mxu0 0.0
    %392 = vmatpush1.msra.mxu0 0.0
    %393 = vmatprep.subr.mxu0 0.0
    %394 = vmatpush1.msra.mxu0 0.0
    %395 = vmatprep.subr.mxu0 0.0
    %396 = vmatpush1.msra.mxu0 0.0
    %397 = vmatprep.subr.mxu0 0.0
    %398 = vmatpush1.msra.mxu0 0.0
    %399 = vmatprep.subr.mxu0 0.0
    %400 = vmatpush1.msra.mxu0 0.0
    %401 = vmatprep.subr.mxu0 0.0
    %402 = vmatpush1.msra.mxu0 0.0
    %403 = vmatprep.subr.mxu0 0.0
    %404 = vmatpush1.msra.mxu0 0.0
    %405 = vmatprep.subr.mxu0 0.0
    %406 = vmatpush1.msra.mxu0 0.0
    %407 = vmatprep.subr.mxu0 0.0
    %408 = vmatpush1.msra.mxu0 0.0
    %409 = vmatprep.subr.mxu0 0.0
    %410 = vmatpush1.msra.mxu0 0.0
    %411 = vmatprep.subr.mxu0 0.0
    %412 = vmatpush1.msra.mxu0 0.0
    %413 = vmatprep.subr.mxu0 0.0
    %414 = vmatpush1.msra.mxu0 0.0
    %415 = vmatprep.subr.mxu0 0.0
    %416 = vmatpush1.msra.mxu0 %v366
    %417 = vmatprep.subr.mxu0 0.0
    %418 = vmatpush1.msra.mxu0 %v365
    %419 = vmatprep.subr.mxu0 0.0
    %420 = vmatpush1.msra.mxu0 %v364
    %421 = vmatprep.subr.mxu0 0.0
    %422 = vmatpush1.msra.mxu0 %v363
    %423 = vmatprep.subr.mxu0 0.0
    %424 = vmatpush2.msra.mxu0 0.0
    %425 = vmatprep.subr.mxu0 0.0
    %426 = vmatpush2.msra.mxu0 0.0
    %427 = vmatprep.subr.mxu0 0.0
    %428 = vmatpush2.msra.mxu0 0.0
    %429 = vmatprep.subr.mxu0 0.0
    %430 = vmatpush2.msra.mxu0 0.0
    %431 = vmatprep.subr.mxu0 0.0
    %432 = vmatpush2.msra.mxu0 0.0
    %433 = vmatprep.subr.mxu0 0.0
    %434 = vmatpush2.msra.mxu0 0.0
    %435 = vmatprep.subr.mxu0 0.0
    %436 = vmatpush2.msra.mxu0 0.0
    %437 = vmatprep.subr.mxu0 0.0
    %438 = vmatpush2.msra.mxu0 0.0
    %439 = vmatprep.subr.mxu0 0.0
    %440 = vmatpush2.msra.mxu0 0.0
    %441 = vmatprep.subr.mxu0 0.0
    %442 = vmatpush2.msra.mxu0 0.0
    %443 = vmatprep.subr.mxu0 0.0
    %444 = vmatpush2.msra.mxu0 0.0
    %445 = vmatprep.subr.mxu0 0.0
    %446 = vmatpush2.msra.mxu0 0.0
    %447 = vmatprep.subr.mxu0 0.0
    %448 = vmatpush2.msra.mxu0 0.0
    %449 = vmatprep.subr.mxu0 0.0
    %450 = vmatpush2.msra.mxu0 0.0
    %451 = vmatprep.subr.mxu0 0.0
    %452 = vmatpush2.msra.mxu0 0.0
    %453 = vmatprep.subr.mxu0 0.0
    %454 = vmatpush2.msra.mxu0 0.0
    %455 = vmatprep.mubr.f32.mxu0 0.0
    %456 = vmatmul.mubr.f32.gmra.mxu0 %v380
    %v457 = vpop.f32.mrf.mxu0
    %v458 = vadd.f32 %v376, %v457
    %v459 = vpop.f32.mrf.mxu0
    %460 = vmatprep.mubr.f32.mxu0 0.0
    %461 = vmatmul.mubr.f32.gmra.mxu0 %v383
    %v462 = vpop.f32.mrf.mxu0
    %v463 = vadd.f32 %v376, %v462
    %v464 = vpop.f32.mrf.mxu0
    %465 = vmatprep.mubr.f32.mxu0 0.0
    %466 = vmatmul.mubr.f32.gmra.mxu0 %v386
    %v467 = vpop.f32.mrf.mxu0
    %v468 = vadd.f32 %v376, %v467
    %v469 = vpop.f32.mrf.mxu0
    %470 = vmatprep.mubr.f32.mxu0 0.0
    %471 = vmatmul.mubr.f32.gmra.mxu0 %v389
    %v472 = vpop.f32.mrf.mxu0
    %v473 = vadd.f32 %v376, %v472
    %v474 = vpop.f32.mrf.mxu0
    %475 = vdwg.mxu0
    %v476 = vld [vmem:[%s2] sm:$0xff]
    %v477 = vld [vmem:[%s3] sm:$0xff]
    %v479 = vsel %vm378, %v476, 0
    %481 = vmatprep.subr.mxu0 0.0
    %482 = vmatpush1.msra.mxu0 0.0
    %483 = vmatprep.subr.mxu0 0.0
    %484 = vmatpush1.msra.mxu0 0.0
    %485 = vmatprep.subr.mxu0 0.0
    %486 = vmatpush1.msra.mxu0 0.0
    %487 = vmatprep.subr.mxu0 0.0
    %488 = vmatpush1.msra.mxu0 0.0
    %489 = vmatprep.subr.mxu0 0.0
    %490 = vmatpush1.msra.mxu0 0.0
    %491 = vmatprep.subr.mxu0 0.0
    %492 = vmatpush1.msra.mxu0 0.0
    %493 = vmatprep.subr.mxu0 0.0
    %494 = vmatpush1.msra.mxu0 0.0
    %495 = vmatprep.subr.mxu0 0.0
    %496 = vmatpush1.msra.mxu0 0.0
    %497 = vmatprep.subr.mxu0 0.0
    %498 = vmatpush1.msra.mxu0 0.0
    %499 = vmatprep.subr.mxu0 0.0
    %500 = vmatpush1.msra.mxu0 0.0
    %501 = vmatprep.subr.mxu0 0.0
    %502 = vmatpush1.msra.mxu0 0.0
    %503 = vmatprep.subr.mxu0 0.0
    %504 = vmatpush1.msra.mxu0 0.0
    %505 = vmatprep.subr.mxu0 0.0
    %506 = vmatpush1.msra.mxu0 %v370
    %507 = vmatprep.subr.mxu0 0.0
    %508 = vmatpush1.msra.mxu0 %v369
    %509 = vmatprep.subr.mxu0 0.0
    %510 = vmatpush1.msra.mxu0 %v368
    %511 = vmatprep.subr.mxu0 0.0
    %512 = vmatpush1.msra.mxu0 %v367
    %513 = vmatprep.subr.mxu0 0.0
    %514 = vmatpush2.msra.mxu0 0.0
    %515 = vmatprep.subr.mxu0 0.0
    %516 = vmatpush2.msra.mxu0 0.0
    %517 = vmatprep.subr.mxu0 0.0
    %518 = vmatpush2.msra.mxu0 0.0
    %519 = vmatprep.subr.mxu0 0.0
    %520 = vmatpush2.msra.mxu0 0.0
    %521 = vmatprep.subr.mxu0 0.0
    %522 = vmatpush2.msra.mxu0 0.0
    %523 = vmatprep.subr.mxu0 0.0
    %524 = vmatpush2.msra.mxu0 0.0
    %525 = vmatprep.subr.mxu0 0.0
    %526 = vmatpush2.msra.mxu0 0.0
    %527 = vmatprep.subr.mxu0 0.0
    %528 = vmatpush2.msra.mxu0 0.0
    %529 = vmatprep.subr.mxu0 0.0
    %530 = vmatpush2.msra.mxu0 0.0
    %531 = vmatprep.subr.mxu0 0.0
    %532 = vmatpush2.msra.mxu0 0.0
    %533 = vmatprep.subr.mxu0 0.0
    %534 = vmatpush2.msra.mxu0 0.0
    %535 = vmatprep.subr.mxu0 0.0
    %536 = vmatpush2.msra.mxu0 0.0
    %537 = vmatprep.subr.mxu0 0.0
    %538 = vmatpush2.msra.mxu0 0.0
    %539 = vmatprep.subr.mxu0 0.0
    %540 = vmatpush2.msra.mxu0 0.0
    %541 = vmatprep.subr.mxu0 0.0
    %542 = vmatpush2.msra.mxu0 0.0
    %543 = vmatprep.subr.mxu0 0.0
    %544 = vmatpush2.msra.mxu0 0.0
    %545 = vmatprep.mubr.f32.mxu0 0.0
    %546 = vmatmul.mubr.f32.gmra.mxu0 %v479
    %v547 = vpop.f32.mrf.mxu0
    %v548 = vadd.f32 0.0, %v547
    %v549 = vpop.f32.mrf.mxu0
    %550 = vdwg.mxu0
    %v551 = vadd.f32 %v458, %v548
    %v552 = vtanh.pop %v551
    %v553 = vxor.u32 %v551, 2147483648
    %v554 = vmul.f32 %v553, 1.442695
    %v555 = vpow.pop %v554
    %v556 = vadd.f32 %v555, 1.0
    %v557 = vrcp.pop %v556
    %v558 = vmul.f32 1.0, %v557
    %v559 = vsel %vm362, %v552, %v558
    %561 = vrot.lane.b32.xlu0 %v477, 32
    %v562 = vpop.permute.xlu0 %561
    %v564 = vmul.f32 %v559, %v562
    %566 = vrot.lane.b32.xlu0 %v559, 64
    %v567 = vpop.permute.xlu0 %566
    %v569 = vmul.f32 %v559, %v567
    %571 = vrot.lane.b32.xlu0 %v569, 32
    %v572 = vpop.permute.xlu0 %571
    %v574 = vadd.f32 %v564, %v572
    %v575 = vtanh.pop %v574
    %577 = vrot.lane.b32.xlu0 %v575, 64
    %v578 = vpop.permute.xlu0 %577
    %v580 = vmul.f32 %v559, %v578
    %582 = vrot.lane.b32.xlu0 %v580, 32
    %v583 = vpop.permute.xlu0 %582
    %v584 = vsel %vm378, %v583, 0
    %586 = vmatprep.subr.mxu0 0.0
    %587 = vmatpush1.msra.mxu0 0.0
    %588 = vmatprep.subr.mxu0 0.0
    %589 = vmatpush1.msra.mxu0 0.0
    %590 = vmatprep.subr.mxu0 0.0
    %591 = vmatpush1.msra.mxu0 0.0
    %592 = vmatprep.subr.mxu0 0.0
    %593 = vmatpush1.msra.mxu0 0.0
    %594 = vmatprep.subr.mxu0 0.0
    %595 = vmatpush1.msra.mxu0 0.0
    %596 = vmatprep.subr.mxu0 0.0
    %597 = vmatpush1.msra.mxu0 0.0
    %598 = vmatprep.subr.mxu0 0.0
    %599 = vmatpush1.msra.mxu0 0.0
    %600 = vmatprep.subr.mxu0 0.0
    %601 = vmatpush1.msra.mxu0 0.0
    %602 = vmatprep.subr.mxu0 0.0
    %603 = vmatpush1.msra.mxu0 0.0
    %604 = vmatprep.subr.mxu0 0.0
    %605 = vmatpush1.msra.mxu0 0.0
    %606 = vmatprep.subr.mxu0 0.0
    %607 = vmatpush1.msra.mxu0 0.0
    %608 = vmatprep.subr.mxu0 0.0
    %609 = vmatpush1.msra.mxu0 0.0
    %610 = vmatprep.subr.mxu0 0.0
    %611 = vmatpush1.msra.mxu0 %v370
    %612 = vmatprep.subr.mxu0 0.0
    %613 = vmatpush1.msra.mxu0 %v369
    %614 = vmatprep.subr.mxu0 0.0
    %615 = vmatpush1.msra.mxu0 %v368
    %616 = vmatprep.subr.mxu0 0.0
    %617 = vmatpush1.msra.mxu0 %v367
    %618 = vmatprep.subr.mxu0 0.0
    %619 = vmatpush2.msra.mxu0 0.0
    %620 = vmatprep.subr.mxu0 0.0
    %621 = vmatpush2.msra.mxu0 0.0
    %622 = vmatprep.subr.mxu0 0.0
    %623 = vmatpush2.msra.mxu0 0.0
    %624 = vmatprep.subr.mxu0 0.0
    %625 = vmatpush2.msra.mxu0 0.0
    %626 = vmatprep.subr.mxu0 0.0
    %627 = vmatpush2.msra.mxu0 0.0
    %628 = vmatprep.subr.mxu0 0.0
    %629 = vmatpush2.msra.mxu0 0.0
    %630 = vmatprep.subr.mxu0 0.0
    %631 = vmatpush2.msra.mxu0 0.0
    %632 = vmatprep.subr.mxu0 0.0
    %633 = vmatpush2.msra.mxu0 0.0
    %634 = vmatprep.subr.mxu0 0.0
    %635 = vmatpush2.msra.mxu0 0.0
    %636 = vmatprep.subr.mxu0 0.0
    %637 = vmatpush2.msra.mxu0 0.0
    %638 = vmatprep.subr.mxu0 0.0
    %639 = vmatpush2.msra.mxu0 0.0
    %640 = vmatprep.subr.mxu0 0.0
    %641 = vmatpush2.msra.mxu0 0.0
    %642 = vmatprep.subr.mxu0 0.0
    %643 = vmatpush2.msra.mxu0 0.0
    %644 = vmatprep.subr.mxu0 0.0
    %645 = vmatpush2.msra.mxu0 0.0
    %646 = vmatprep.subr.mxu0 0.0
    %647 = vmatpush2.msra.mxu0 0.0
    %648 = vmatprep.subr.mxu0 0.0
    %649 = vmatpush2.msra.mxu0 0.0
    %650 = vmatprep.mubr.f32.mxu0 0.0
    %651 = vmatmul.mubr.f32.gmra.mxu0 %v584
    %v652 = vpop.f32.mrf.mxu0
    %v653 = vadd.f32 0.0, %v652
    %v654 = vpop.f32.mrf.mxu0
    %655 = vdwg.mxu0
    %v656 = vadd.f32 %v463, %v653
    %v657 = vtanh.pop %v656
    %v658 = vxor.u32 %v656, 2147483648
    %v659 = vmul.f32 %v658, 1.442695
    %v660 = vpow.pop %v659
    %v661 = vadd.f32 %v660, 1.0
    %v662 = vrcp.pop %v661
    %v663 = vmul.f32 1.0, %v662
    %v664 = vsel %vm362, %v657, %v663
    %v665 = vmul.f32 %v664, %v574
    %667 = vrot.lane.b32.xlu0 %v664, 64
    %v668 = vpop.permute.xlu0 %667
    %v670 = vmul.f32 %v664, %v668
    %672 = vrot.lane.b32.xlu0 %v670, 32
    %v673 = vpop.permute.xlu0 %672
    %v675 = vadd.f32 %v665, %v673
    %v676 = vtanh.pop %v675
    %678 = vrot.lane.b32.xlu0 %v676, 64
    %v679 = vpop.permute.xlu0 %678
    %v681 = vmul.f32 %v664, %v679
    %683 = vrot.lane.b32.xlu0 %v681, 32
    %v684 = vpop.permute.xlu0 %683
    %v685 = vsel %vm378, %v684, 0
    %687 = vmatprep.subr.mxu0 0.0
    %688 = vmatpush1.msra.mxu0 0.0
    %689 = vmatprep.subr.mxu0 0.0
    %690 = vmatpush1.msra.mxu0 0.0
    %691 = vmatprep.subr.mxu0 0.0
    %692 = vmatpush1.msra.mxu0 0.0
    %693 = vmatprep.subr.mxu0 0.0
    %694 = vmatpush1.msra.mxu0 0.0
    %695 = vmatprep.subr.mxu0 0.0
    %696 = vmatpush1.msra.mxu0 0.0
    %697 = vmatprep.subr.mxu0 0.0
    %698 = vmatpush1.msra.mxu0 0.0
    %699 = vmatprep.subr.mxu0 0.0
    %700 = vmatpush1.msra.mxu0 0.0
    %701 = vmatprep.subr.mxu0 0.0
    %702 = vmatpush1.msra.mxu0 0.0
    %703 = vmatprep.subr.mxu0 0.0
    %704 = vmatpush1.msra.mxu0 0.0
    %705 = vmatprep.subr.mxu0 0.0
    %706 = vmatpush1.msra.mxu0 0.0
    %707 = vmatprep.subr.mxu0 0.0
    %708 = vmatpush1.msra.mxu0 0.0
    %709 = vmatprep.subr.mxu0 0.0
    %710 = vmatpush1.msra.mxu0 0.0
    %711 = vmatprep.subr.mxu0 0.0
    %712 = vmatpush1.msra.mxu0 %v370
    %713 = vmatprep.subr.mxu0 0.0
    %714 = vmatpush1.msra.mxu0 %v369
    %715 = vmatprep.subr.mxu0 0.0
    %716 = vmatpush1.msra.mxu0 %v368
    %717 = vmatprep.subr.mxu0 0.0
    %718 = vmatpush1.msra.mxu0 %v367
    %719 = vmatprep.subr.mxu0 0.0
    %720 = vmatpush2.msra.mxu0 0.0
    %721 = vmatprep.subr.mxu0 0.0
    %722 = vmatpush2.msra.mxu0 0.0
    %723 = vmatprep.subr.mxu0 0.0
    %724 = vmatpush2.msra.mxu0 0.0
    %725 = vmatprep.subr.mxu0 0.0
    %726 = vmatpush2.msra.mxu0 0.0
    %727 = vmatprep.subr.mxu0 0.0
    %728 = vmatpush2.msra.mxu0 0.0
    %729 = vmatprep.subr.mxu0 0.0
    %730 = vmatpush2.msra.mxu0 0.0
    %731 = vmatprep.subr.mxu0 0.0
    %732 = vmatpush2.msra.mxu0 0.0
    %733 = vmatprep.subr.mxu0 0.0
    %734 = vmatpush2.msra.mxu0 0.0
    %735 = vmatprep.subr.mxu0 0.0
    %736 = vmatpush2.msra.mxu0 0.0
    %737 = vmatprep.subr.mxu0 0.0
    %738 = vmatpush2.msra.mxu0 0.0
    %739 = vmatprep.subr.mxu0 0.0
    %740 = vmatpush2.msra.mxu0 0.0
    %741 = vmatprep.subr.mxu0 0.0
    %742 = vmatpush2.msra.mxu0 0.0
    %743 = vmatprep.subr.mxu0 0.0
    %744 = vmatpush2.msra.mxu0 0.0
    %745 = vmatprep.subr.mxu0 0.0
    %746 = vmatpush2.msra.mxu0 0.0
    %747 = vmatprep.subr.mxu0 0.0
    %748 = vmatpush2.msra.mxu0 0.0
    %749 = vmatprep.subr.mxu0 0.0
    %750 = vmatpush2.msra.mxu0 0.0
    %751 = vmatprep.mubr.f32.mxu0 0.0
    %752 = vmatmul.mubr.f32.gmra.mxu0 %v685
    %v753 = vpop.f32.mrf.mxu0
    %v754 = vadd.f32 0.0, %v753
    %v755 = vpop.f32.mrf.mxu0
    %756 = vdwg.mxu0
    %v757 = vadd.f32 %v468, %v754
    %v758 = vtanh.pop %v757
    %v759 = vxor.u32 %v757, 2147483648
    %v760 = vmul.f32 %v759, 1.442695
    %v761 = vpow.pop %v760
    %v762 = vadd.f32 %v761, 1.0
    %v763 = vrcp.pop %v762
    %v764 = vmul.f32 1.0, %v763
    %v765 = vsel %vm362, %v758, %v764
    %v766 = vmul.f32 %v765, %v675
    %768 = vrot.lane.b32.xlu0 %v765, 64
    %v769 = vpop.permute.xlu0 %768
    %v771 = vmul.f32 %v765, %v769
    %773 = vrot.lane.b32.xlu0 %v771, 32
    %v774 = vpop.permute.xlu0 %773
    %v776 = vadd.f32 %v766, %v774
    %v777 = vtanh.pop %v776
    %779 = vrot.lane.b32.xlu0 %v777, 64
    %v780 = vpop.permute.xlu0 %779
    %v782 = vmul.f32 %v765, %v780
    %784 = vrot.lane.b32.xlu0 %v782, 32
    %v785 = vpop.permute.xlu0 %784
    %v786 = vsel %vm378, %v785, 0
    %788 = vmatprep.subr.mxu0 0.0
    %789 = vmatpush1.msra.mxu0 0.0
    %790 = vmatprep.subr.mxu0 0.0
    %791 = vmatpush1.msra.mxu0 0.0
    %792 = vmatprep.subr.mxu0 0.0
    %793 = vmatpush1.msra.mxu0 0.0
    %794 = vmatprep.subr.mxu0 0.0
    %795 = vmatpush1.msra.mxu0 0.0
    %796 = vmatprep.subr.mxu0 0.0
    %797 = vmatpush1.msra.mxu0 0.0
    %798 = vmatprep.subr.mxu0 0.0
    %799 = vmatpush1.msra.mxu0 0.0
    %800 = vmatprep.subr.mxu0 0.0
    %801 = vmatpush1.msra.mxu0 0.0
    %802 = vmatprep.subr.mxu0 0.0
    %803 = vmatpush1.msra.mxu0 0.0
    %804 = vmatprep.subr.mxu0 0.0
    %805 = vmatpush1.msra.mxu0 0.0
    %806 = vmatprep.subr.mxu0 0.0
    %807 = vmatpush1.msra.mxu0 0.0
    %808 = vmatprep.subr.mxu0 0.0
    %809 = vmatpush1.msra.mxu0 0.0
    %810 = vmatprep.subr.mxu0 0.0
    %811 = vmatpush1.msra.mxu0 0.0
    %812 = vmatprep.subr.mxu0 0.0
    %813 = vmatpush1.msra.mxu0 %v370
    %814 = vmatprep.subr.mxu0 0.0
    %815 = vmatpush1.msra.mxu0 %v369
    %816 = vmatprep.subr.mxu0 0.0
    %817 = vmatpush1.msra.mxu0 %v368
    %818 = vmatprep.subr.mxu0 0.0
    %819 = vmatpush1.msra.mxu0 %v367
    %820 = vmatprep.subr.mxu0 0.0
    %821 = vmatpush2.msra.mxu0 0.0
    %822 = vmatprep.subr.mxu0 0.0
    %823 = vmatpush2.msra.mxu0 0.0
    %824 = vmatprep.subr.mxu0 0.0
    %825 = vmatpush2.msra.mxu0 0.0
    %826 = vmatprep.subr.mxu0 0.0
    %827 = vmatpush2.msra.mxu0 0.0
    %828 = vmatprep.subr.mxu0 0.0
    %829 = vmatpush2.msra.mxu0 0.0
    %830 = vmatprep.subr.mxu0 0.0
    %831 = vmatpush2.msra.mxu0 0.0
    %832 = vmatprep.subr.mxu0 0.0
    %833 = vmatpush2.msra.mxu0 0.0
    %834 = vmatprep.subr.mxu0 0.0
    %835 = vmatpush2.msra.mxu0 0.0
    %836 = vmatprep.subr.mxu0 0.0
    %837 = vmatpush2.msra.mxu0 0.0
    %838 = vmatprep.subr.mxu0 0.0
    %839 = vmatpush2.msra.mxu0 0.0
    %840 = vmatprep.subr.mxu0 0.0
    %841 = vmatpush2.msra.mxu0 0.0
    %842 = vmatprep.subr.mxu0 0.0
    %843 = vmatpush2.msra.mxu0 0.0
    %844 = vmatprep.subr.mxu0 0.0
    %845 = vmatpush2.msra.mxu0 0.0
    %846 = vmatprep.subr.mxu0 0.0
    %847 = vmatpush2.msra.mxu0 0.0
    %848 = vmatprep.subr.mxu0 0.0
    %849 = vmatpush2.msra.mxu0 0.0
    %850 = vmatprep.subr.mxu0 0.0
    %851 = vmatpush2.msra.mxu0 0.0
    %852 = vmatprep.mubr.f32.mxu0 0.0
    %853 = vmatmul.mubr.f32.gmra.mxu0 %v786
    %v854 = vpop.f32.mrf.mxu0
    %v855 = vadd.f32 0.0, %v854
    %v856 = vpop.f32.mrf.mxu0
    %857 = vdwg.mxu0
    %v858 = vadd.f32 %v473, %v855
    %v859 = vtanh.pop %v858
    %v860 = vxor.u32 %v858, 2147483648
    %v861 = vmul.f32 %v860, 1.442695
    %v862 = vpow.pop %v861
    %v863 = vadd.f32 %v862, 1.0
    %v864 = vrcp.pop %v863
    %v865 = vmul.f32 1.0, %v864
    %v866 = vsel %vm362, %v859, %v865
    %v867 = vmul.f32 %v866, %v776
    %869 = vrot.lane.b32.xlu0 %v866, 64
    %v870 = vpop.permute.xlu0 %869
    %v872 = vmul.f32 %v866, %v870
    %874 = vrot.lane.b32.xlu0 %v872, 32
    %v875 = vpop.permute.xlu0 %874
    %v877 = vadd.f32 %v867, %v875
    %v878 = vtanh.pop %v877
    %880 = vrot.lane.b32.xlu0 %v878, 64
    %v881 = vpop.permute.xlu0 %880
    %v883 = vmul.f32 %v866, %v881
    %885 = vrot.lane.b32.xlu0 %v883, 32
    %v886 = vpop.permute.xlu0 %885
    %888 = vst.msk [vmem:[#allocation6] sm:$0xff] %vm378, %v886
    %890 = vrot.lane.b32.xlu0 %v877, 96
    %v891 = vpop.permute.xlu0 %890
    %893 = vst.msk [vmem:[#allocation8] sm:$0xff] %vm378, %v891
    %v894 = vld [vmem:[%s7] sm:$0xff]
    %v895 = vld [vmem:[%s7 + $0x8] sm:$0xff]
    %v896 = vld [vmem:[%s7 + $0x10] sm:$0xff]
    %v897 = vld [vmem:[%s7 + $0x18] sm:$0xff]
    %v898 = vld [vmem:[%s8] sm:$0xff]
    %v899 = vld [vmem:[%s8 + $0x8] sm:$0xff]
    %v900 = vld [vmem:[%s8 + $0x10] sm:$0xff]
    %v901 = vld [vmem:[%s8 + $0x18] sm:$0xff]
    %v902 = vld [vmem:[%s9] sm:$0x1]
    %v904 = vlaneseq
    %v905 = vshrl.u32 %v904, 7
    %v906 = vsub.s32 0, %v905
    %v907 = vrot.slane %v902, %v906
    %v909 = vsel %vm378, %v886, 0
    %911 = vmatprep.subr.mxu0 0.0
    %912 = vmatpush1.msra.mxu0 0.0
    %913 = vmatprep.subr.mxu0 0.0
    %914 = vmatpush1.msra.mxu0 0.0
    %915 = vmatprep.subr.mxu0 0.0
    %916 = vmatpush1.msra.mxu0 0.0
    %917 = vmatprep.subr.mxu0 0.0
    %918 = vmatpush1.msra.mxu0 0.0
    %919 = vmatprep.subr.mxu0 0.0
    %920 = vmatpush1.msra.mxu0 0.0
    %921 = vmatprep.subr.mxu0 0.0
    %922 = vmatpush1.msra.mxu0 0.0
    %923 = vmatprep.subr.mxu0 0.0
    %924 = vmatpush1.msra.mxu0 0.0
    %925 = vmatprep.subr.mxu0 0.0
    %926 = vmatpush1.msra.mxu0 0.0
    %927 = vmatprep.subr.mxu0 0.0
    %928 = vmatpush1.msra.mxu0 0.0
    %929 = vmatprep.subr.mxu0 0.0
    %930 = vmatpush1.msra.mxu0 0.0
    %931 = vmatprep.subr.mxu0 0.0
    %932 = vmatpush1.msra.mxu0 0.0
    %933 = vmatprep.subr.mxu0 0.0
    %934 = vmatpush1.msra.mxu0 0.0
    %935 = vmatprep.subr.mxu0 0.0
    %936 = vmatpush1.msra.mxu0 %v897
    %937 = vmatprep.subr.mxu0 0.0
    %938 = vmatpush1.msra.mxu0 %v896
    %939 = vmatprep.subr.mxu0 0.0
    %940 = vmatpush1.msra.mxu0 %v895
    %941 = vmatprep.subr.mxu0 0.0
    %942 = vmatpush1.msra.mxu0 %v894
    %943 = vmatprep.subr.mxu0 0.0
    %944 = vmatpush2.msra.mxu0 0.0
    %945 = vmatprep.subr.mxu0 0.0
    %946 = vmatpush2.msra.mxu0 0.0
    %947 = vmatprep.subr.mxu0 0.0
    %948 = vmatpush2.msra.mxu0 0.0
    %949 = vmatprep.subr.mxu0 0.0
    %950 = vmatpush2.msra.mxu0 0.0
    %951 = vmatprep.subr.mxu0 0.0
    %952 = vmatpush2.msra.mxu0 0.0
    %953 = vmatprep.subr.mxu0 0.0
    %954 = vmatpush2.msra.mxu0 0.0
    %955 = vmatprep.subr.mxu0 0.0
    %956 = vmatpush2.msra.mxu0 0.0
    %957 = vmatprep.subr.mxu0 0.0
    %958 = vmatpush2.msra.mxu0 0.0
    %959 = vmatprep.subr.mxu0 0.0
    %960 = vmatpush2.msra.mxu0 0.0
    %961 = vmatprep.subr.mxu0 0.0
    %962 = vmatpush2.msra.mxu0 0.0
    %963 = vmatprep.subr.mxu0 0.0
    %964 = vmatpush2.msra.mxu0 0.0
    %965 = vmatprep.subr.mxu0 0.0
    %966 = vmatpush2.msra.mxu0 0.0
    %967 = vmatprep.subr.mxu0 0.0
    %968 = vmatpush2.msra.mxu0 0.0
    %969 = vmatprep.subr.mxu0 0.0
    %970 = vmatpush2.msra.mxu0 0.0
    %971 = vmatprep.subr.mxu0 0.0
    %972 = vmatpush2.msra.mxu0 0.0
    %973 = vmatprep.subr.mxu0 0.0
    %974 = vmatpush2.msra.mxu0 0.0
    %975 = vmatprep.mubr.f32.mxu0 0.0
    %976 = vmatmul.mubr.f32.gmra.mxu0 %v584
    %v977 = vpop.f32.mrf.mxu0
    %v978 = vadd.f32 %v907, %v977
    %v979 = vpop.f32.mrf.mxu0
    %980 = vmatprep.mubr.f32.mxu0 0.0
    %981 = vmatmul.mubr.f32.gmra.mxu0 %v685
    %v982 = vpop.f32.mrf.mxu0
    %v983 = vadd.f32 %v907, %v982
    %v984 = vpop.f32.mrf.mxu0
    %985 = vmatprep.mubr.f32.mxu0 0.0
    %986 = vmatmul.mubr.f32.gmra.mxu0 %v786
    %v987 = vpop.f32.mrf.mxu0
    %v988 = vadd.f32 %v907, %v987
    %v989 = vpop.f32.mrf.mxu0
    %990 = vmatprep.mubr.f32.mxu0 0.0
    %991 = vmatmul.mubr.f32.gmra.mxu0 %v909
    %v992 = vpop.f32.mrf.mxu0
    %v993 = vadd.f32 %v907, %v992
    %v994 = vpop.f32.mrf.mxu0
    %995 = vdwg.mxu0
    %s996 = scalar_lea.vmem %s2, 8
    %v997 = vld [vmem:[%s996] sm:$0xff]
    %s998 = scalar_lea.vmem %s3, 8
    %v999 = vld [vmem:[%s998] sm:$0xff]
    %v1001 = vsel %vm378, %v997, 0
    %1003 = vmatprep.subr.mxu0 0.0
    %1004 = vmatpush1.msra.mxu0 0.0
    %1005 = vmatprep.subr.mxu0 0.0
    %1006 = vmatpush1.msra.mxu0 0.0
    %1007 = vmatprep.subr.mxu0 0.0
    %1008 = vmatpush1.msra.mxu0 0.0
    %1009 = vmatprep.subr.mxu0 0.0
    %1010 = vmatpush1.msra.mxu0 0.0
    %1011 = vmatprep.subr.mxu0 0.0
    %1012 = vmatpush1.msra.mxu0 0.0
    %1013 = vmatprep.subr.mxu0 0.0
    %1014 = vmatpush1.msra.mxu0 0.0
    %1015 = vmatprep.subr.mxu0 0.0
    %1016 = vmatpush1.msra.mxu0 0.0
    %1017 = vmatprep.subr.mxu0 0.0
    %1018 = vmatpush1.msra.mxu0 0.0
    %1019 = vmatprep.subr.mxu0 0.0
    %1020 = vmatpush1.msra.mxu0 0.0
    %1021 = vmatprep.subr.mxu0 0.0
    %1022 = vmatpush1.msra.mxu0 0.0
    %1023 = vmatprep.subr.mxu0 0.0
    %1024 = vmatpush1.msra.mxu0 0.0
    %1025 = vmatprep.subr.mxu0 0.0
    %1026 = vmatpush1.msra.mxu0 0.0
    %1027 = vmatprep.subr.mxu0 0.0
    %1028 = vmatpush1.msra.mxu0 %v901
    %1029 = vmatprep.subr.mxu0 0.0
    %1030 = vmatpush1.msra.mxu0 %v900
    %1031 = vmatprep.subr.mxu0 0.0
    %1032 = vmatpush1.msra.mxu0 %v899
    %1033 = vmatprep.subr.mxu0 0.0
    %1034 = vmatpush1.msra.mxu0 %v898
    %1035 = vmatprep.subr.mxu0 0.0
    %1036 = vmatpush2.msra.mxu0 0.0
    %1037 = vmatprep.subr.mxu0 0.0
    %1038 = vmatpush2.msra.mxu0 0.0
    %1039 = vmatprep.subr.mxu0 0.0
    %1040 = vmatpush2.msra.mxu0 0.0
    %1041 = vmatprep.subr.mxu0 0.0
    %1042 = vmatpush2.msra.mxu0 0.0
    %1043 = vmatprep.subr.mxu0 0.0
    %1044 = vmatpush2.msra.mxu0 0.0
    %1045 = vmatprep.subr.mxu0 0.0
    %1046 = vmatpush2.msra.mxu0 0.0
    %1047 = vmatprep.subr.mxu0 0.0
    %1048 = vmatpush2.msra.mxu0 0.0
    %1049 = vmatprep.subr.mxu0 0.0
    %1050 = vmatpush2.msra.mxu0 0.0
    %1051 = vmatprep.subr.mxu0 0.0
    %1052 = vmatpush2.msra.mxu0 0.0
    %1053 = vmatprep.subr.mxu0 0.0
    %1054 = vmatpush2.msra.mxu0 0.0
    %1055 = vmatprep.subr.mxu0 0.0
    %1056 = vmatpush2.msra.mxu0 0.0
    %1057 = vmatprep.subr.mxu0 0.0
    %1058 = vmatpush2.msra.mxu0 0.0
    %1059 = vmatprep.subr.mxu0 0.0
    %1060 = vmatpush2.msra.mxu0 0.0
    %1061 = vmatprep.subr.mxu0 0.0
    %1062 = vmatpush2.msra.mxu0 0.0
    %1063 = vmatprep.subr.mxu0 0.0
    %1064 = vmatpush2.msra.mxu0 0.0
    %1065 = vmatprep.subr.mxu0 0.0
    %1066 = vmatpush2.msra.mxu0 0.0
    %1067 = vmatprep.mubr.f32.mxu0 0.0
    %1068 = vmatmul.mubr.f32.gmra.mxu0 %v1001
    %v1069 = vpop.f32.mrf.mxu0
    %v1070 = vadd.f32 0.0, %v1069
    %v1071 = vpop.f32.mrf.mxu0
    %1072 = vdwg.mxu0
    %v1073 = vadd.f32 %v978, %v1070
    %v1074 = vtanh.pop %v1073
    %v1075 = vxor.u32 %v1073, 2147483648
    %v1076 = vmul.f32 %v1075, 1.442695
    %v1077 = vpow.pop %v1076
    %v1078 = vadd.f32 %v1077, 1.0
    %v1079 = vrcp.pop %v1078
    %v1080 = vmul.f32 1.0, %v1079
    %v1081 = vsel %vm362, %v1074, %v1080
    %1083 = vrot.lane.b32.xlu0 %v999, 32
    %v1084 = vpop.permute.xlu0 %1083
    %v1086 = vmul.f32 %v1081, %v1084
    %1088 = vrot.lane.b32.xlu0 %v1081, 64
    %v1089 = vpop.permute.xlu0 %1088
    %v1091 = vmul.f32 %v1081, %v1089
    %1093 = vrot.lane.b32.xlu0 %v1091, 32
    %v1094 = vpop.permute.xlu0 %1093
    %v1096 = vadd.f32 %v1086, %v1094
    %v1097 = vtanh.pop %v1096
    %1099 = vrot.lane.b32.xlu0 %v1097, 64
    %v1100 = vpop.permute.xlu0 %1099
    %v1102 = vmul.f32 %v1081, %v1100
    %1104 = vrot.lane.b32.xlu0 %v1102, 32
    %v1105 = vpop.permute.xlu0 %1104
    %v1106 = vsel %vm378, %v1105, 0
    %1108 = vmatprep.subr.mxu0 0.0
    %1109 = vmatpush1.msra.mxu0 0.0
    %1110 = vmatprep.subr.mxu0 0.0
    %1111 = vmatpush1.msra.mxu0 0.0
    %1112 = vmatprep.subr.mxu0 0.0
    %1113 = vmatpush1.msra.mxu0 0.0
    %1114 = vmatprep.subr.mxu0 0.0
    %1115 = vmatpush1.msra.mxu0 0.0
    %1116 = vmatprep.subr.mxu0 0.0
    %1117 = vmatpush1.msra.mxu0 0.0
    %1118 = vmatprep.subr.mxu0 0.0
    %1119 = vmatpush1.msra.mxu0 0.0
    %1120 = vmatprep.subr.mxu0 0.0
    %1121 = vmatpush1.msra.mxu0 0.0
    %1122 = vmatprep.subr.mxu0 0.0
    %1123 = vmatpush1.msra.mxu0 0.0
    %1124 = vmatprep.subr.mxu0 0.0
    %1125 = vmatpush1.msra.mxu0 0.0
    %1126 = vmatprep.subr.mxu0 0.0
    %1127 = vmatpush1.msra.mxu0 0.0
    %1128 = vmatprep.subr.mxu0 0.0
    %1129 = vmatpush1.msra.mxu0 0.0
    %1130 = vmatprep.subr.mxu0 0.0
    %1131 = vmatpush1.msra.mxu0 0.0
    %1132 = vmatprep.subr.mxu0 0.0
    %1133 = vmatpush1.msra.mxu0 %v901
    %1134 = vmatprep.subr.mxu0 0.0
    %1135 = vmatpush1.msra.mxu0 %v900
    %1136 = vmatprep.subr.mxu0 0.0
    %1137 = vmatpush1.msra.mxu0 %v899
    %1138 = vmatprep.subr.mxu0 0.0
    %1139 = vmatpush1.msra.mxu0 %v898
    %1140 = vmatprep.subr.mxu0 0.0
    %1141 = vmatpush2.msra.mxu0 0.0
    %1142 = vmatprep.subr.mxu0 0.0
    %1143 = vmatpush2.msra.mxu0 0.0
    %1144 = vmatprep.subr.mxu0 0.0
    %1145 = vmatpush2.msra.mxu0 0.0
    %1146 = vmatprep.subr.mxu0 0.0
    %1147 = vmatpush2.msra.mxu0 0.0
    %1148 = vmatprep.subr.mxu0 0.0
    %1149 = vmatpush2.msra.mxu0 0.0
    %1150 = vmatprep.subr.mxu0 0.0
    %1151 = vmatpush2.msra.mxu0 0.0
    %1152 = vmatprep.subr.mxu0 0.0
    %1153 = vmatpush2.msra.mxu0 0.0
    %1154 = vmatprep.subr.mxu0 0.0
    %1155 = vmatpush2.msra.mxu0 0.0
    %1156 = vmatprep.subr.mxu0 0.0
    %1157 = vmatpush2.msra.mxu0 0.0
    %1158 = vmatprep.subr.mxu0 0.0
    %1159 = vmatpush2.msra.mxu0 0.0
    %1160 = vmatprep.subr.mxu0 0.0
    %1161 = vmatpush2.msra.mxu0 0.0
    %1162 = vmatprep.subr.mxu0 0.0
    %1163 = vmatpush2.msra.mxu0 0.0
    %1164 = vmatprep.subr.mxu0 0.0
    %1165 = vmatpush2.msra.mxu0 0.0
    %1166 = vmatprep.subr.mxu0 0.0
    %1167 = vmatpush2.msra.mxu0 0.0
    %1168 = vmatprep.subr.mxu0 0.0
    %1169 = vmatpush2.msra.mxu0 0.0
    %1170 = vmatprep.subr.mxu0 0.0
    %1171 = vmatpush2.msra.mxu0 0.0
    %1172 = vmatprep.mubr.f32.mxu0 0.0
    %1173 = vmatmul.mubr.f32.gmra.mxu0 %v1106
    %v1174 = vpop.f32.mrf.mxu0
    %v1175 = vadd.f32 0.0, %v1174
    %v1176 = vpop.f32.mrf.mxu0
    %1177 = vdwg.mxu0
    %v1178 = vadd.f32 %v983, %v1175
    %v1179 = vtanh.pop %v1178
    %v1180 = vxor.u32 %v1178, 2147483648
    %v1181 = vmul.f32 %v1180, 1.442695
    %v1182 = vpow.pop %v1181
    %v1183 = vadd.f32 %v1182, 1.0
    %v1184 = vrcp.pop %v1183
    %v1185 = vmul.f32 1.0, %v1184
    %v1186 = vsel %vm362, %v1179, %v1185
    %v1187 = vmul.f32 %v1186, %v1096
    %1189 = vrot.lane.b32.xlu0 %v1186, 64
    %v1190 = vpop.permute.xlu0 %1189
    %v1192 = vmul.f32 %v1186, %v1190
    %1194 = vrot.lane.b32.xlu0 %v1192, 32
    %v1195 = vpop.permute.xlu0 %1194
    %v1197 = vadd.f32 %v1187, %v1195
    %v1198 = vtanh.pop %v1197
    %1200 = vrot.lane.b32.xlu0 %v1198, 64
    %v1201 = vpop.permute.xlu0 %1200
    %v1203 = vmul.f32 %v1186, %v1201
    %1205 = vrot.lane.b32.xlu0 %v1203, 32
    %v1206 = vpop.permute.xlu0 %1205
    %v1207 = vsel %vm378, %v1206, 0
    %1209 = vmatprep.subr.mxu0 0.0
    %1210 = vmatpush1.msra.mxu0 0.0
    %1211 = vmatprep.subr.mxu0 0.0
    %1212 = vmatpush1.msra.mxu0 0.0
    %1213 = vmatprep.subr.mxu0 0.0
    %1214 = vmatpush1.msra.mxu0 0.0
    %1215 = vmatprep.subr.mxu0 0.0
    %1216 = vmatpush1.msra.mxu0 0.0
    %1217 = vmatprep.subr.mxu0 0.0
    %1218 = vmatpush1.msra.mxu0 0.0
    %1219 = vmatprep.subr.mxu0 0.0
    %1220 = vmatpush1.msra.mxu0 0.0
    %1221 = vmatprep.subr.mxu0 0.0
    %1222 = vmatpush1.msra.mxu0 0.0
    %1223 = vmatprep.subr.mxu0 0.0
    %1224 = vmatpush1.msra.mxu0 0.0
    %1225 = vmatprep.subr.mxu0 0.0
    %1226 = vmatpush1.msra.mxu0 0.0
    %1227 = vmatprep.subr.mxu0 0.0
    %1228 = vmatpush1.msra.mxu0 0.0
    %1229 = vmatprep.subr.mxu0 0.0
    %1230 = vmatpush1.msra.mxu0 0.0
    %1231 = vmatprep.subr.mxu0 0.0
    %1232 = vmatpush1.msra.mxu0 0.0
    %1233 = vmatprep.subr.mxu0 0.0
    %1234 = vmatpush1.msra.mxu0 %v901
    %1235 = vmatprep.subr.mxu0 0.0
    %1236 = vmatpush1.msra.mxu0 %v900
    %1237 = vmatprep.subr.mxu0 0.0
    %1238 = vmatpush1.msra.mxu0 %v899
    %1239 = vmatprep.subr.mxu0 0.0
    %1240 = vmatpush1.msra.mxu0 %v898
    %1241 = vmatprep.subr.mxu0 0.0
    %1242 = vmatpush2.msra.mxu0 0.0
    %1243 = vmatprep.subr.mxu0 0.0
    %1244 = vmatpush2.msra.mxu0 0.0
    %1245 = vmatprep.subr.mxu0 0.0
    %1246 = vmatpush2.msra.mxu0 0.0
    %1247 = vmatprep.subr.mxu0 0.0
    %1248 = vmatpush2.msra.mxu0 0.0
    %1249 = vmatprep.subr.mxu0 0.0
    %1250 = vmatpush2.msra.mxu0 0.0
    %1251 = vmatprep.subr.mxu0 0.0
    %1252 = vmatpush2.msra.mxu0 0.0
    %1253 = vmatprep.subr.mxu0 0.0
    %1254 = vmatpush2.msra.mxu0 0.0
    %1255 = vmatprep.subr.mxu0 0.0
    %1256 = vmatpush2.msra.mxu0 0.0
    %1257 = vmatprep.subr.mxu0 0.0
    %1258 = vmatpush2.msra.mxu0 0.0
    %1259 = vmatprep.subr.mxu0 0.0
    %1260 = vmatpush2.msra.mxu0 0.0
    %1261 = vmatprep.subr.mxu0 0.0
    %1262 = vmatpush2.msra.mxu0 0.0
    %1263 = vmatprep.subr.mxu0 0.0
    %1264 = vmatpush2.msra.mxu0 0.0
    %1265 = vmatprep.subr.mxu0 0.0
    %1266 = vmatpush2.msra.mxu0 0.0
    %1267 = vmatprep.subr.mxu0 0.0
    %1268 = vmatpush2.msra.mxu0 0.0
    %1269 = vmatprep.subr.mxu0 0.0
    %1270 = vmatpush2.msra.mxu0 0.0
    %1271 = vmatprep.subr.mxu0 0.0
    %1272 = vmatpush2.msra.mxu0 0.0
    %1273 = vmatprep.mubr.f32.mxu0 0.0
    %1274 = vmatmul.mubr.f32.gmra.mxu0 %v1207
    %v1275 = vpop.f32.mrf.mxu0
    %v1276 = vadd.f32 0.0, %v1275
    %v1277 = vpop.f32.mrf.mxu0
    %1278 = vdwg.mxu0
    %v1279 = vadd.f32 %v988, %v1276
    %v1280 = vtanh.pop %v1279
    %v1281 = vxor.u32 %v1279, 2147483648
    %v1282 = vmul.f32 %v1281, 1.442695
    %v1283 = vpow.pop %v1282
    %v1284 = vadd.f32 %v1283, 1.0
    %v1285 = vrcp.pop %v1284
    %v1286 = vmul.f32 1.0, %v1285
    %v1287 = vsel %vm362, %v1280, %v1286
    %v1288 = vmul.f32 %v1287, %v1197
    %1290 = vrot.lane.b32.xlu0 %v1287, 64
    %v1291 = vpop.permute.xlu0 %1290
    %v1293 = vmul.f32 %v1287, %v1291
    %1295 = vrot.lane.b32.xlu0 %v1293, 32
    %v1296 = vpop.permute.xlu0 %1295
    %v1298 = vadd.f32 %v1288, %v1296
    %v1299 = vtanh.pop %v1298
    %1301 = vrot.lane.b32.xlu0 %v1299, 64
    %v1302 = vpop.permute.xlu0 %1301
    %v1304 = vmul.f32 %v1287, %v1302
    %1306 = vrot.lane.b32.xlu0 %v1304, 32
    %v1307 = vpop.permute.xlu0 %1306
    %v1308 = vsel %vm378, %v1307, 0
    %1310 = vmatprep.subr.mxu0 0.0
    %1311 = vmatpush1.msra.mxu0 0.0
    %1312 = vmatprep.subr.mxu0 0.0
    %1313 = vmatpush1.msra.mxu0 0.0
    %1314 = vmatprep.subr.mxu0 0.0
    %1315 = vmatpush1.msra.mxu0 0.0
    %1316 = vmatprep.subr.mxu0 0.0
    %1317 = vmatpush1.msra.mxu0 0.0
    %1318 = vmatprep.subr.mxu0 0.0
    %1319 = vmatpush1.msra.mxu0 0.0
    %1320 = vmatprep.subr.mxu0 0.0
    %1321 = vmatpush1.msra.mxu0 0.0
    %1322 = vmatprep.subr.mxu0 0.0
    %1323 = vmatpush1.msra.mxu0 0.0
    %1324 = vmatprep.subr.mxu0 0.0
    %1325 = vmatpush1.msra.mxu0 0.0
    %1326 = vmatprep.subr.mxu0 0.0
    %1327 = vmatpush1.msra.mxu0 0.0
    %1328 = vmatprep.subr.mxu0 0.0
    %1329 = vmatpush1.msra.mxu0 0.0
    %1330 = vmatprep.subr.mxu0 0.0
    %1331 = vmatpush1.msra.mxu0 0.0
    %1332 = vmatprep.subr.mxu0 0.0
    %1333 = vmatpush1.msra.mxu0 0.0
    %1334 = vmatprep.subr.mxu0 0.0
    %1335 = vmatpush1.msra.mxu0 %v901
    %1336 = vmatprep.subr.mxu0 0.0
    %1337 = vmatpush1.msra.mxu0 %v900
    %1338 = vmatprep.subr.mxu0 0.0
    %1339 = vmatpush1.msra.mxu0 %v899
    %1340 = vmatprep.subr.mxu0 0.0
    %1341 = vmatpush1.msra.mxu0 %v898
    %1342 = vmatprep.subr.mxu0 0.0
    %1343 = vmatpush2.msra.mxu0 0.0
    %1344 = vmatprep.subr.mxu0 0.0
    %1345 = vmatpush2.msra.mxu0 0.0
    %1346 = vmatprep.subr.mxu0 0.0
    %1347 = vmatpush2.msra.mxu0 0.0
    %1348 = vmatprep.subr.mxu0 0.0
    %1349 = vmatpush2.msra.mxu0 0.0
    %1350 = vmatprep.subr.mxu0 0.0
    %1351 = vmatpush2.msra.mxu0 0.0
    %1352 = vmatprep.subr.mxu0 0.0
    %1353 = vmatpush2.msra.mxu0 0.0
    %1354 = vmatprep.subr.mxu0 0.0
    %1355 = vmatpush2.msra.mxu0 0.0
    %1356 = vmatprep.subr.mxu0 0.0
    %1357 = vmatpush2.msra.mxu0 0.0
    %1358 = vmatprep.subr.mxu0 0.0
    %1359 = vmatpush2.msra.mxu0 0.0
    %1360 = vmatprep.subr.mxu0 0.0
    %1361 = vmatpush2.msra.mxu0 0.0
    %1362 = vmatprep.subr.mxu0 0.0
    %1363 = vmatpush2.msra.mxu0 0.0
    %1364 = vmatprep.subr.mxu0 0.0
    %1365 = vmatpush2.msra.mxu0 0.0
    %1366 = vmatprep.subr.mxu0 0.0
    %1367 = vmatpush2.msra.mxu0 0.0
    %1368 = vmatprep.subr.mxu0 0.0
    %1369 = vmatpush2.msra.mxu0 0.0
    %1370 = vmatprep.subr.mxu0 0.0
    %1371 = vmatpush2.msra.mxu0 0.0
    %1372 = vmatprep.subr.mxu0 0.0
    %1373 = vmatpush2.msra.mxu0 0.0
    %1374 = vmatprep.mubr.f32.mxu0 0.0
    %1375 = vmatmul.mubr.f32.gmra.mxu0 %v1308
    %v1376 = vpop.f32.mrf.mxu0
    %v1377 = vadd.f32 0.0, %v1376
    %v1378 = vpop.f32.mrf.mxu0
    %1379 = vdwg.mxu0
    %v1380 = vadd.f32 %v993, %v1377
    %v1381 = vtanh.pop %v1380
    %v1382 = vxor.u32 %v1380, 2147483648
    %v1383 = vmul.f32 %v1382, 1.442695
    %v1384 = vpow.pop %v1383
    %v1385 = vadd.f32 %v1384, 1.0
    %v1386 = vrcp.pop %v1385
    %v1387 = vmul.f32 1.0, %v1386
    %v1388 = vsel %vm362, %v1381, %v1387
    %v1389 = vmul.f32 %v1388, %v1298
    %1391 = vrot.lane.b32.xlu0 %v1388, 64
    %v1392 = vpop.permute.xlu0 %1391
    %v1394 = vmul.f32 %v1388, %v1392
    %1396 = vrot.lane.b32.xlu0 %v1394, 32
    %v1397 = vpop.permute.xlu0 %1396
    %v1399 = vadd.f32 %v1389, %v1397
    %v1400 = vtanh.pop %v1399
    %1402 = vrot.lane.b32.xlu0 %v1400, 64
    %v1403 = vpop.permute.xlu0 %1402
    %v1405 = vmul.f32 %v1388, %v1403
    %1407 = vrot.lane.b32.xlu0 %v1405, 32
    %v1408 = vpop.permute.xlu0 %1407
    %s1410 = scalar_lea.vmem [#allocation6], 8
    %1411 = vst.msk [vmem:[%s1410] sm:$0xff] %vm378, %v1408
    %1413 = vrot.lane.b32.xlu0 %v1399, 96
    %v1414 = vpop.permute.xlu0 %1413
    %s1416 = scalar_lea.vmem [#allocation8], 8
    %1417 = vst.msk [vmem:[%s1416] sm:$0xff] %vm378, %v1414
    %1419 = vrot.lane.b32.xlu0 %v1203, 64
    %v1420 = vpop.permute.xlu0 %1419
    %1422 = vrot.lane.b32.xlu0 %v1304, 96
    %v1423 = vpop.permute.xlu0 %1422
    %v1425 = vsel %vm378, %v1105, %v1420
    %vm1426 = vcmask 523264
    %v1427 = vsel %vm1426, %v1425, %v1423
    %vm1428 = vcmask 785408
    %v1429 = vsel %vm1428, %v1427, %v1405
    %v1430 = vld [vmem:[%s10] sm:$0xff]
    %v1431 = vld [vmem:[%s10 + $0x8] sm:$0xff]
    %v1432 = vld [vmem:[%s10 + $0x10] sm:$0xff]
    %v1433 = vld [vmem:[%s10 + $0x18] sm:$0xff]
    %v1434 = vld [vmem:[%s10 + $0x20] sm:$0xff]
    %v1435 = vld [vmem:[%s10 + $0x28] sm:$0xff]
    %v1436 = vld [vmem:[%s10 + $0x30] sm:$0xff]
    %v1437 = vld [vmem:[%s10 + $0x38] sm:$0xff]
    %v1438 = vld [vmem:[%s10 + $0x40] sm:$0xff]
    %v1439 = vld [vmem:[%s10 + $0x48] sm:$0xff]
    %v1440 = vld [vmem:[%s10 + $0x50] sm:$0xff]
    %v1441 = vld [vmem:[%s10 + $0x58] sm:$0xff]
    %v1442 = vld [vmem:[%s10 + $0x60] sm:$0xff]
    %v1443 = vld [vmem:[%s10 + $0x68] sm:$0xff]
    %v1444 = vld [vmem:[%s10 + $0x70] sm:$0xff]
    %v1445 = vld [vmem:[%s10 + $0x78] sm:$0xff]
    %v1446 = vld [vmem:[%s11] sm:$0x1]
    %v1448 = vlaneseq
    %v1449 = vshrl.u32 %v1448, 7
    %v1450 = vsub.s32 0, %v1449
    %v1451 = vrot.slane %v1446, %v1450
    %1453 = vmatprep.subr.mxu0 0.0
    %1454 = vmatpush1.msra.mxu0 %v1445
    %1455 = vmatprep.subr.mxu0 0.0
    %1456 = vmatpush1.msra.mxu0 %v1444
    %1457 = vmatprep.subr.mxu0 0.0
    %1458 = vmatpush1.msra.mxu0 %v1443
    %1459 = vmatprep.subr.mxu0 0.0
    %1460 = vmatpush1.msra.mxu0 %v1442
    %1461 = vmatprep.subr.mxu0 0.0
    %1462 = vmatpush1.msra.mxu0 %v1441
    %1463 = vmatprep.subr.mxu0 0.0
    %1464 = vmatpush1.msra.mxu0 %v1440
    %1465 = vmatprep.subr.mxu0 0.0
    %1466 = vmatpush1.msra.mxu0 %v1439
    %1467 = vmatprep.subr.mxu0 0.0
    %1468 = vmatpush1.msra.mxu0 %v1438
    %1469 = vmatprep.subr.mxu0 0.0
    %1470 = vmatpush1.msra.mxu0 %v1437
    %1471 = vmatprep.subr.mxu0 0.0
    %1472 = vmatpush1.msra.mxu0 %v1436
    %1473 = vmatprep.subr.mxu0 0.0
    %1474 = vmatpush1.msra.mxu0 %v1435
    %1475 = vmatprep.subr.mxu0 0.0
    %1476 = vmatpush1.msra.mxu0 %v1434
    %1477 = vmatprep.subr.mxu0 0.0
    %1478 = vmatpush1.msra.mxu0 %v1433
    %1479 = vmatprep.subr.mxu0 0.0
    %1480 = vmatpush1.msra.mxu0 %v1432
    %1481 = vmatprep.subr.mxu0 0.0
    %1482 = vmatpush1.msra.mxu0 %v1431
    %1483 = vmatprep.subr.mxu0 0.0
    %1484 = vmatpush1.msra.mxu0 %v1430
    %1485 = vmatprep.subr.mxu0 0.0
    %1486 = vmatpush2.msra.mxu0 0.0
    %1487 = vmatprep.subr.mxu0 0.0
    %1488 = vmatpush2.msra.mxu0 0.0
    %1489 = vmatprep.subr.mxu0 0.0
    %1490 = vmatpush2.msra.mxu0 0.0
    %1491 = vmatprep.subr.mxu0 0.0
    %1492 = vmatpush2.msra.mxu0 0.0
    %1493 = vmatprep.subr.mxu0 0.0
    %1494 = vmatpush2.msra.mxu0 0.0
    %1495 = vmatprep.subr.mxu0 0.0
    %1496 = vmatpush2.msra.mxu0 0.0
    %1497 = vmatprep.subr.mxu0 0.0
    %1498 = vmatpush2.msra.mxu0 0.0
    %1499 = vmatprep.subr.mxu0 0.0
    %1500 = vmatpush2.msra.mxu0 0.0
    %1501 = vmatprep.subr.mxu0 0.0
    %1502 = vmatpush2.msra.mxu0 0.0
    %1503 = vmatprep.subr.mxu0 0.0
    %1504 = vmatpush2.msra.mxu0 0.0
    %1505 = vmatprep.subr.mxu0 0.0
    %1506 = vmatpush2.msra.mxu0 0.0
    %1507 = vmatprep.subr.mxu0 0.0
    %1508 = vmatpush2.msra.mxu0 0.0
    %1509 = vmatprep.subr.mxu0 0.0
    %1510 = vmatpush2.msra.mxu0 0.0
    %1511 = vmatprep.subr.mxu0 0.0
    %1512 = vmatpush2.msra.mxu0 0.0
    %1513 = vmatprep.subr.mxu0 0.0
    %1514 = vmatpush2.msra.mxu0 0.0
    %1515 = vmatprep.subr.mxu0 0.0
    %1516 = vmatpush2.msra.mxu0 0.0
    %1517 = vmatprep.mubr.f32.mxu0 0.0
    %1518 = vmatmul.mubr.f32.gmra.mxu0 %v1429
    %v1519 = vpop.f32.mrf.mxu0
    %v1520 = vadd.f32 %v1451, %v1519
    %v1521 = vpop.f32.mrf.mxu0
    %1522 = vdwg.mxu0
    %1523 = vst.msk [vmem:[#allocation5] sm:$0xff] %vm1426, %v1520
    // Predicated region
    $region54: #{tpu_custom_call.1} parent=1 // pred_check
      _
    $region55: #{tpu_custom_call.1} parent=1 // pred_check_branch
      %1525 = sbr.rel (0) target = $region57
    $region56: #{tpu_custom_call.1} parent=1 // pred_region
      %s1527 = ssub.s32 128, 128
      %1528 = vsyncadd [#allocation3], %s1527
      %s1530 = sshll.u32 [#allocation5], 4
      %s1531 = int_to_ptr.vmem [resolvable:$true] %s1530
      %1533 = dma.vmem_to_hbm [thread:$0]  %s1531, 128, %s12, [#allocation3]
    $region57: #{tpu_custom_call.1} parent=1 // pred_fallthru
      _
    // Predicated region
    $region58: #{tpu_custom_call.1} parent=1 // pred_check
      _
    $region59: #{tpu_custom_call.1} parent=1 // pred_check_branch
      %1535 = sbr.rel (0) target = $region61
    $region60: #{tpu_custom_call.1} parent=1 // pred_region
      %s1537 = ssub.s32 256, 256
      %1538 = vsyncadd [#allocation7], %s1537
      %s1539 = sshll.u32 [#allocation6], 4
      %s1540 = int_to_ptr.vmem [resolvable:$true] %s1539
      %1545 = dma.vmem_to_hbm [thread:$0]  %s1540, 256, %s13, [#allocation7], 128, 128, 8
    $region61: #{tpu_custom_call.1} parent=1 // pred_fallthru
      _
    // Predicated region
    $region62: #{tpu_custom_call.1} parent=1 // pred_check
      _
    $region63: #{tpu_custom_call.1} parent=1 // pred_check_branch
      %1547 = sbr.rel (0) target = $region65
    $region64: #{tpu_custom_call.1} parent=1 // pred_region
      %s1549 = ssub.s32 256, 256
      %1550 = vsyncadd [#allocation7], %s1549
      %s1551 = sshll.u32 [#allocation8], 4
      %s1552 = int_to_ptr.vmem [resolvable:$true] %s1551
      %1557 = dma.vmem_to_hbm [thread:$0]  %s1552, 256, %s14, [#allocation7], 128, 128, 8
    $region65: #{tpu_custom_call.1} parent=1 // pred_fallthru
      _
    // Predicated region
    $region66: #{tpu_custom_call.1} parent=1 // pred_check
      _
    $region67: #{tpu_custom_call.1} parent=1 // pred_check_branch
      %1559 = sbr.rel (0) target = $region69
    $region68: #{tpu_custom_call.1} parent=1 // pred_region
      %1560 = dma.done [#allocation3], 128
    $region69: #{tpu_custom_call.1} parent=1 // pred_fallthru
      _
    // Predicated region
    $region70: #{tpu_custom_call.1} parent=1 // pred_check
      _
    $region71: #{tpu_custom_call.1} parent=1 // pred_check_branch
      %1562 = sbr.rel (0) target = $region73
    $region72: #{tpu_custom_call.1} parent=1 // pred_region
      %1563 = dma.done [#allocation7], 256
    $region73: #{tpu_custom_call.1} parent=1 // pred_fallthru
      _
    // Predicated region
    $region74: #{tpu_custom_call.1} parent=1 // pred_check
      _
    $region75: #{tpu_custom_call.1} parent=1 // pred_check_branch
      %1565 = sbr.rel (0) target = $region77
    $region76: #{tpu_custom_call.1} parent=1 // pred_region
      %1566 = dma.done [#allocation7], 256
    $region77: #{tpu_custom_call.1} parent=1 // pred_fallthru
      _
    %1567 = vsyncpa [#allocation3], 1
    %1568 = vsyncpa [#allocation7], 1
    %1569 = vsyncpa [#allocation4], 1

</llo_original>
